<compile_context>
chip_gen: v7x
topology: tpu7x:2x2x1
jax: 0.10.0
libtpu: 0.0.40
codegen_flags: <defaults>
</compile_context>

<pallas_src>
import functools
from typing import NamedTuple

import jax
import jax.numpy as jnp
from jax.experimental import pallas as pl
from jax.experimental.pallas import tpu as pltpu


def _round_up(x, m):
    return (x + m - 1) // m * m


def _cdiv(a, b):
    return (a + b - 1) // b


def _hw_info():
    """Returns (feat_align, vmem_capacity_bytes, prefer_multicore_grid)."""
    kind = ""
    try:
        kind = (getattr(jax.devices()[0], "device_kind", "") or "").lower()
    except Exception:
        pass
    vmem_cap = None
    try:
        vmem_cap = int(pltpu.get_tpu_info().vmem_capacity_bytes)
    except Exception:
        vmem_cap = None
    if not vmem_cap or vmem_cap <= 0:
        if "v7" in kind:
            vmem_cap = 64 << 20       # 64 MiB per TensorCore on v7x
        elif "v5" in kind or "v6" in kind:
            vmem_cap = 128 << 20      # 128 MiB on v5e / v6e
        else:
            vmem_cap = 64 << 20       # conservative default for unknown parts
    # 2x256^2 MXU on v6e/v7x -> align features to 256; 4x128^2 on v5e -> 128.
    feat_align = 256 if ("v6" in kind or "v7" in kind) else 128
    prefer_multicore = "v7" in kind   # 2 TensorCores per chip
    return feat_align, vmem_cap, prefer_multicore


class PreparedMLP(NamedTuple):
    padded_params: tuple    # ((W bf16 [in_pad,out_pad], b f32 [1,out_pad]), ...)
    in_dim: int
    out_dim: int
    feat_pads: tuple


def prepare_mlp_params(params, *, feat_align=None):
    """One-time pad + bf16 cast of weights (hoisted out of the per-call path)."""
    if feat_align is None:
        feat_align, _, _ = _hw_info()
    in_dim = params[0][0].shape[0]
    out_dim = params[-1][0].shape[1]
    feat_pads = [_round_up(in_dim, feat_align)]
    padded = []
    for l, (w, b) in enumerate(params):
        din, dout = w.shape
        feat_pads.append(_round_up(dout, feat_align))
        w_p = jnp.pad(w, ((0, feat_pads[l] - din), (0, feat_pads[l + 1] - dout)))
        b_p = jnp.pad(jnp.reshape(b, (1, dout)),
                      ((0, 0), (0, feat_pads[l + 1] - dout)))
        padded.append((w_p.astype(jnp.bfloat16), b_p.astype(jnp.float32)))
    return PreparedMLP(tuple(padded), in_dim, out_dim, tuple(feat_pads))


def _make_mlp_kernel(n_layers):
    """Kernel over refs: (x, w1, b1, ..., wN, bN, out)."""

    def kernel(x_ref, *refs):
        o_ref = refs[-1]
        wb_refs = refs[:-1]
        h = x_ref[...].astype(jnp.bfloat16)      # in-kernel cast (VPU filler)
        for l in range(n_layers):
            w_ref = wb_refs[2 * l]
            b_ref = wb_refs[2 * l + 1]
            acc = jnp.dot(h, w_ref[...],         # bf16 x bf16 -> f32 on the MXU
                          preferred_element_type=jnp.float32)
            acc = acc + b_ref[...]               # f32 bias broadcast (VPU)
            if l < n_layers - 1:
                h = jnp.maximum(acc, 0.0).astype(jnp.bfloat16)
            else:
                o_ref[...] = acc.astype(o_ref.dtype)

    return kernel


@functools.partial(
    jax.jit,
    static_argnames=("tile_b", "out_dim", "out_dtype", "vmem_limit",
                     "weight_buffers"),
)
def _mlp_forward_pallas(x, padded_params, *, tile_b, out_dim, out_dtype,
                        vmem_limit, weight_buffers):
    B, in_dim = x.shape
    n_layers = len(padded_params)
    in_pad = padded_params[0][0].shape[0]
    out_pad = padded_params[-1][0].shape[1]
    b_pad = _round_up(B, tile_b)

    # Pad batch + input features; x stays f32 (cast to bf16 happens in-kernel).
    x_p = jnp.pad(x, ((0, b_pad - B), (0, in_pad - in_dim)))
    grid = (b_pad // tile_b,)

    # Weights/biases: constant index_map (fetched once, VMEM-resident),
    # explicitly single-buffered when requested.
    wb_kwargs = {"pipeline_mode": pl.Buffered(1)} if weight_buffers == 1 else {}
    in_specs = [pl.BlockSpec((tile_b, in_pad), lambda i: (i, 0))]
    flat_args = [x_p]
    for w_p, b_p in padded_params:
        in_specs.append(pl.BlockSpec(w_p.shape, lambda i: (0, 0), **wb_kwargs))
        in_specs.append(pl.BlockSpec(b_p.shape, lambda i: (0, 0), **wb_kwargs))
        flat_args.extend([w_p, b_p])
    out_specs = pl.BlockSpec((tile_b, out_pad), lambda i: (i, 0))

    out_itemsize = 2 if out_dtype in (jnp.bfloat16, jnp.float16) else 4
    flops = 2 * b_pad * sum(w.shape[0] * w.shape[1] for w, _ in padded_params)
    bytes_accessed = (
        x_p.size * 4
        + sum(w.size * 2 + b.size * 4 for w, b in padded_params)
        + b_pad * out_pad * out_itemsize
    )

    out_p = pl.pallas_call(
        _make_mlp_kernel(n_layers),
        out_shape=jax.ShapeDtypeStruct((b_pad, out_pad), out_dtype),
        grid=grid,
        in_specs=in_specs,
        out_specs=out_specs,
        compiler_params=pltpu.CompilerParams(
            dimension_semantics=("parallel",),
            vmem_limit_bytes=vmem_limit,
        ),
        cost_estimate=pl.CostEstimate(
            flops=flops, transcendentals=0, bytes_accessed=bytes_accessed),
    )(*flat_args)

    return out_p[:B, :out_dim]


def _mlp_fallback(x, padded_params, out_dim, out_dtype):
    # TODO(synk): tile the widest layer over its output-feature (N) dim with a
    # second grid axis / pltpu.emit_pipeline instead of this XLA fallback when
    # the resident weights do not fit in VMEM.
    in_pad = padded_params[0][0].shape[0]
    h = jnp.pad(x, ((0, 0), (0, in_pad - x.shape[1]))).astype(jnp.bfloat16)
    n_layers = len(padded_params)
    for l, (w, b) in enumerate(padded_params):
        acc = jnp.dot(h, w, preferred_element_type=jnp.float32) + b
        if l < n_layers - 1:
            h = jnp.maximum(acc, 0.0).astype(jnp.bfloat16)
        else:
            h = acc
    return h[:, :out_dim].astype(out_dtype)


def mlp_forward(x, prepared, *, max_tile_b=512, out_dtype=jnp.bfloat16):
    """x: [B, in_dim] f32.  prepared: PreparedMLP from prepare_mlp_params."""
    padded_params, _in_dim, out_dim, feat_pads = prepared
    B = x.shape[0]
    _, vmem_cap, prefer_multicore = _hw_info()

    # Generation-aware budget: <=85% of physical VMEM, keeping headroom for
    # Mosaic internal scratch (important on v7x, where physical VMEM is 64 MiB).
    vmem_budget = min(int(0.85 * vmem_cap), vmem_cap - (8 << 20))

    in_pad, out_pad, max_pad = feat_pads[0], feat_pads[-1], max(feat_pads)
    out_itemsize = 2 if out_dtype in (jnp.bfloat16, jnp.float16) else 4
    # Weights/biases single-buffered (pl.Buffered(1)).
    resident = sum(w.size * 2 + b.size * 4 for w, b in padded_params)

    def tile_bytes(tb):
        t = 2 * tb * in_pad * 4                  # f32 x tile, double buffered
        t += 2 * tb * out_pad * out_itemsize     # out tile, double buffered
        t += 3 * tb * max_pad * 4                # live f32 acc + bf16 h headroom
        return t

    # Batch tile: minimise last-tile waste; on v7x prefer >=2 grid steps so
    # dimension_semantics=("parallel",) occupies both TensorCores.
    n_tiles = max(1, _cdiv(B, max_tile_b))
    if prefer_multicore and n_tiles == 1 and B >= 32:
        n_tiles = 2
    tile_b = _round_up(_cdiv(B, n_tiles), 16)
    while tile_b > 16 and resident + tile_bytes(tile_b) + (2 << 20) > vmem_budget:
        tile_b = max(16, _round_up(tile_b // 2, 16))

    if resident + tile_bytes(16) + (2 << 20) > vmem_budget:
        # Weights cannot be VMEM-resident on this generation -> guarded fallback.
        return _mlp_fallback(x, padded_params, out_dim, out_dtype)

    needed = resident + tile_bytes(tile_b) + (2 << 20)
    vmem_limit = int(min(max(needed, 16 << 20), vmem_budget))

    kwargs = dict(tile_b=tile_b, out_dim=out_dim, out_dtype=out_dtype)
    try:
        return _mlp_forward_pallas(x, padded_params, vmem_limit=vmem_limit,
                                   weight_buffers=1, **kwargs)
    except Exception:
        # Conservative retry with default (double) buffering on the resident
        # weights, widening the VMEM budget accordingly.
        vmem_limit2 = int(min(max(needed + resident, 16 << 20), vmem_budget))
        return _mlp_forward_pallas(x, padded_params, vmem_limit=vmem_limit2,
                                   weight_buffers=2, **kwargs)


def init_mlp_params(key, in_dim, dim, out_dim, n_hidden_layers=3):
    """nn.Linear-style init; W stored transposed as [in, out], b as [1, out]."""
    params = []
    dims = []
    prev = in_dim
    for _ in range(n_hidden_layers):
        dims.append((prev, dim))
        prev = dim
    dims.append((prev, out_dim))

    for (fan_in, fan_out) in dims:
        key, kw, kb = jax.random.split(key, 3)
        bound = 1.0 / (fan_in ** 0.5)
        w_pt = jax.random.uniform(kw, (fan_out, fan_in), jnp.float32, -bound, bound)
        b_pt = jax.random.uniform(kb, (fan_out,), jnp.float32, -bound, bound)
        params.append((w_pt.T, b_pt.reshape(1, fan_out)))
    return params


def mlp_reference(x, params, *, emulate_bf16=True):
    """Pure-JAX reference; mirrors the kernel's bf16-input / f32-acc numerics."""
    def q(a):
        return a.astype(jnp.bfloat16).astype(jnp.float32) if emulate_bf16 else a

    h = q(x)
    for i, (w, b) in enumerate(params):
        h = h @ q(w) + b
        if i < len(params) - 1:
            h = q(jnp.maximum(h, 0.0))
    return h


if __name__ == "__main__":
    key = jax.random.PRNGKey(0)
    k_x, k_p = jax.random.split(key)

    B, in_dim, dim, out_dim = 8, 32, 64, 16
    x = jax.random.normal(k_x, (B, in_dim), jnp.float32)
    params = init_mlp_params(k_p, in_dim, dim, out_dim, n_hidden_layers=3)

    prepared = prepare_mlp_params(params)        # one-time pad + bf16 cast
    out = mlp_forward(x, prepared)               # bf16 output by default
    out = jax.block_until_ready(out)
    out_f32 = out.astype(jnp.float32)

    ref_bf16 = mlp_reference(x, params, emulate_bf16=True)
    ref_bf16_q = ref_bf16.astype(jnp.bfloat16).astype(jnp.float32)  # kernel stores bf16
    ref_f32 = mlp_reference(x, params, emulate_bf16=False)

    assert out.shape == (B, out_dim)
    assert out.dtype == jnp.bfloat16
    # Tight check against a reference that mirrors the kernel's bf16 casts.
    assert jnp.allclose(out_f32, ref_bf16_q, atol=2e-2, rtol=2e-2)
    # Looser sanity check against the pure-f32 MLP.
    assert jnp.allclose(out_f32, ref_f32, atol=7e-2, rtol=7e-2)

    print("KERNEL_OK")
</pallas_src>

<mosaic_0001>
module attributes {stable_mosaic.version = 11 : i64} {
  func.func @kernel(%arg0: i32, %arg1: memref<16x128xf32, #tpu.memory_space<vmem>>, %arg2: memref<128x128xbf16, #tpu.memory_space<vmem>>, %arg3: memref<1x128xf32, #tpu.memory_space<vmem>>, %arg4: memref<128x128xbf16, #tpu.memory_space<vmem>>, %arg5: memref<1x128xf32, #tpu.memory_space<vmem>>, %arg6: memref<128x128xbf16, #tpu.memory_space<vmem>>, %arg7: memref<1x128xf32, #tpu.memory_space<vmem>>, %arg8: memref<128x128xbf16, #tpu.memory_space<vmem>>, %arg9: memref<1x128xf32, #tpu.memory_space<vmem>>, %arg10: memref<16x128xbf16, #tpu.memory_space<vmem>>) attributes {dimension_semantics = [#tpu.dimension_semantics<parallel>], iteration_bounds = array<i64: 1>, scalar_prefetch = 0 : i64, scratch_operands = 0 : i64, tpu.core_type = #tpu.core_type<tc>, window_params = [{transform_indices = @transform_0, window_bounds = array<i64: 16, 128>}, {pipeline_mode = #tpu.pipeline_mode<synchronous>, transform_indices = @transform_1, window_bounds = array<i64: 128, 128>}, {pipeline_mode = #tpu.pipeline_mode<synchronous>, transform_indices = @transform_2, window_bounds = array<i64: 1, 128>}, {pipeline_mode = #tpu.pipeline_mode<synchronous>, transform_indices = @transform_3, window_bounds = array<i64: 128, 128>}, {pipeline_mode = #tpu.pipeline_mode<synchronous>, transform_indices = @transform_4, window_bounds = array<i64: 1, 128>}, {pipeline_mode = #tpu.pipeline_mode<synchronous>, transform_indices = @transform_5, window_bounds = array<i64: 128, 128>}, {pipeline_mode = #tpu.pipeline_mode<synchronous>, transform_indices = @transform_6, window_bounds = array<i64: 1, 128>}, {pipeline_mode = #tpu.pipeline_mode<synchronous>, transform_indices = @transform_7, window_bounds = array<i64: 128, 128>}, {pipeline_mode = #tpu.pipeline_mode<synchronous>, transform_indices = @transform_8, window_bounds = array<i64: 1, 128>}, {transform_indices = @transform_9, window_bounds = array<i64: 16, 128>}]} {
    %c0 = arith.constant 0 : index
    %c0_0 = arith.constant 0 : index
    %0 = vector.load %arg1[%c0, %c0_0] : memref<16x128xf32, #tpu.memory_space<vmem>>, vector<16x128xf32>
    %1 = arith.truncf %0 : vector<16x128xf32> to vector<16x128xbf16>
    %c0_1 = arith.constant 0 : index
    %c0_2 = arith.constant 0 : index
    %2 = vector.load %arg2[%c0_1, %c0_2] : memref<128x128xbf16, #tpu.memory_space<vmem>>, vector<128x128xbf16>
    %cst = arith.constant dense<0.000000e+00> : vector<16x128xf32>
    %3 = tpu.matmul %1, %2, %cst {dimension_numbers = #tpu.dot_dimension_numbers<[1], [0], [0], [1], [0, 0, 1, 1], [], []>} : vector<16x128xbf16>, vector<128x128xbf16>, vector<16x128xf32> -> vector<16x128xf32>
    %c0_3 = arith.constant 0 : index
    %c0_4 = arith.constant 0 : index
    %4 = vector.load %arg3[%c0_3, %c0_4] : memref<1x128xf32, #tpu.memory_space<vmem>>, vector<1x128xf32>
    %5 = vector.broadcast %4 : vector<1x128xf32> to vector<16x128xf32>
    %6 = arith.addf %3, %5 : vector<16x128xf32>
    %cst_5 = arith.constant 0.000000e+00 : f32
    %7 = vector.broadcast %cst_5 : f32 to vector<16x128xf32>
    %8 = arith.maximumf %6, %7 : vector<16x128xf32>
    %9 = arith.truncf %8 : vector<16x128xf32> to vector<16x128xbf16>
    %c0_6 = arith.constant 0 : index
    %c0_7 = arith.constant 0 : index
    %10 = vector.load %arg4[%c0_6, %c0_7] : memref<128x128xbf16, #tpu.memory_space<vmem>>, vector<128x128xbf16>
    %cst_8 = arith.constant dense<0.000000e+00> : vector<16x128xf32>
    %11 = tpu.matmul %9, %10, %cst_8 {dimension_numbers = #tpu.dot_dimension_numbers<[1], [0], [0], [1], [0, 0, 1, 1], [], []>} : vector<16x128xbf16>, vector<128x128xbf16>, vector<16x128xf32> -> vector<16x128xf32>
    %c0_9 = arith.constant 0 : index
    %c0_10 = arith.constant 0 : index
    %12 = vector.load %arg5[%c0_9, %c0_10] : memref<1x128xf32, #tpu.memory_space<vmem>>, vector<1x128xf32>
    %13 = vector.broadcast %12 : vector<1x128xf32> to vector<16x128xf32>
    %14 = arith.addf %11, %13 : vector<16x128xf32>
    %cst_11 = arith.constant 0.000000e+00 : f32
    %15 = vector.broadcast %cst_11 : f32 to vector<16x128xf32>
    %16 = arith.maximumf %14, %15 : vector<16x128xf32>
    %17 = arith.truncf %16 : vector<16x128xf32> to vector<16x128xbf16>
    %c0_12 = arith.constant 0 : index
    %c0_13 = arith.constant 0 : index
    %18 = vector.load %arg6[%c0_12, %c0_13] : memref<128x128xbf16, #tpu.memory_space<vmem>>, vector<128x128xbf16>
    %cst_14 = arith.constant dense<0.000000e+00> : vector<16x128xf32>
    %19 = tpu.matmul %17, %18, %cst_14 {dimension_numbers = #tpu.dot_dimension_numbers<[1], [0], [0], [1], [0, 0, 1, 1], [], []>} : vector<16x128xbf16>, vector<128x128xbf16>, vector<16x128xf32> -> vector<16x128xf32>
    %c0_15 = arith.constant 0 : index
    %c0_16 = arith.constant 0 : index
    %20 = vector.load %arg7[%c0_15, %c0_16] : memref<1x128xf32, #tpu.memory_space<vmem>>, vector<1x128xf32>
    %21 = vector.broadcast %20 : vector<1x128xf32> to vector<16x128xf32>
    %22 = arith.addf %19, %21 : vector<16x128xf32>
    %cst_17 = arith.constant 0.000000e+00 : f32
    %23 = vector.broadcast %cst_17 : f32 to vector<16x128xf32>
    %24 = arith.maximumf %22, %23 : vector<16x128xf32>
    %25 = arith.truncf %24 : vector<16x128xf32> to vector<16x128xbf16>
    %c0_18 = arith.constant 0 : index
    %c0_19 = arith.constant 0 : index
    %26 = vector.load %arg8[%c0_18, %c0_19] : memref<128x128xbf16, #tpu.memory_space<vmem>>, vector<128x128xbf16>
    %cst_20 = arith.constant dense<0.000000e+00> : vector<16x128xf32>
    %27 = tpu.matmul %25, %26, %cst_20 {dimension_numbers = #tpu.dot_dimension_numbers<[1], [0], [0], [1], [0, 0, 1, 1], [], []>} : vector<16x128xbf16>, vector<128x128xbf16>, vector<16x128xf32> -> vector<16x128xf32>
    %c0_21 = arith.constant 0 : index
    %c0_22 = arith.constant 0 : index
    %28 = vector.load %arg9[%c0_21, %c0_22] : memref<1x128xf32, #tpu.memory_space<vmem>>, vector<1x128xf32>
    %29 = vector.broadcast %28 : vector<1x128xf32> to vector<16x128xf32>
    %30 = arith.addf %27, %29 : vector<16x128xf32>
    %31 = arith.truncf %30 : vector<16x128xf32> to vector<16x128xbf16>
    %c0_23 = arith.constant 0 : index
    %c0_24 = arith.constant 0 : index
    %32 = vector.load %arg10[%c0_23, %c0_24] : memref<16x128xbf16, #tpu.memory_space<vmem>>, vector<16x128xbf16>
    tpu.vector_store %arg10[%c0_23, %c0_24], %31 {strides = array<i32>} : memref<16x128xbf16, #tpu.memory_space<vmem>>, vector<16x128xbf16>,
    return
  }
  func.func @transform_0(%arg0: i32) -> (i32, i32) {
    %c0_i32 = arith.constant 0 : i32
    %c0_i32_0 = arith.constant 0 : i32
    return %arg0, %c0_i32 : i32, i32
  }
  func.func @transform_1(%arg0: i32) -> (i32, i32) {
    %c0_i32 = arith.constant 0 : i32
    %c0_i32_0 = arith.constant 0 : i32
    %c0_i32_1 = arith.constant 0 : i32
    return %c0_i32, %c0_i32_0 : i32, i32
  }
  func.func @transform_2(%arg0: i32) -> (i32, i32) {
    %c0_i32 = arith.constant 0 : i32
    %c0_i32_0 = arith.constant 0 : i32
    %c0_i32_1 = arith.constant 0 : i32
    return %c0_i32, %c0_i32_0 : i32, i32
  }
  func.func @transform_3(%arg0: i32) -> (i32, i32) {
    %c0_i32 = arith.constant 0 : i32
    %c0_i32_0 = arith.constant 0 : i32
    %c0_i32_1 = arith.constant 0 : i32
    return %c0_i32, %c0_i32_0 : i32, i32
  }
  func.func @transform_4(%arg0: i32) -> (i32, i32) {
    %c0_i32 = arith.constant 0 : i32
    %c0_i32_0 = arith.constant 0 : i32
    %c0_i32_1 = arith.constant 0 : i32
    return %c0_i32, %c0_i32_0 : i32, i32
  }
  func.func @transform_5(%arg0: i32) -> (i32, i32) {
    %c0_i32 = arith.constant 0 : i32
    %c0_i32_0 = arith.constant 0 : i32
    %c0_i32_1 = arith.constant 0 : i32
    return %c0_i32, %c0_i32_0 : i32, i32
  }
  func.func @transform_6(%arg0: i32) -> (i32, i32) {
    %c0_i32 = arith.constant 0 : i32
    %c0_i32_0 = arith.constant 0 : i32
    %c0_i32_1 = arith.constant 0 : i32
    return %c0_i32, %c0_i32_0 : i32, i32
  }
  func.func @transform_7(%arg0: i32) -> (i32, i32) {
    %c0_i32 = arith.constant 0 : i32
    %c0_i32_0 = arith.constant 0 : i32
    %c0_i32_1 = arith.constant 0 : i32
    return %c0_i32, %c0_i32_0 : i32, i32
  }
  func.func @transform_8(%arg0: i32) -> (i32, i32) {
    %c0_i32 = arith.constant 0 : i32
    %c0_i32_0 = arith.constant 0 : i32
    %c0_i32_1 = arith.constant 0 : i32
    return %c0_i32, %c0_i32_0 : i32, i32
  }
  func.func @transform_9(%arg0: i32) -> (i32, i32) {
    %c0_i32 = arith.constant 0 : i32
    %c0_i32_0 = arith.constant 0 : i32
    return %arg0, %c0_i32 : i32, i32
  }
}

module attributes {stable_mosaic.version = 11 : i64} {
  func.func @kernel(%arg0: i32, %arg1: memref<16x128xf32, #tpu.memory_space<vmem>>, %arg2: memref<128x128xbf16, #tpu.memory_space<vmem>>, %arg3: memref<1x128xf32, #tpu.memory_space<vmem>>, %arg4: memref<128x128xbf16, #tpu.memory_space<vmem>>, %arg5: memref<1x128xf32, #tpu.memory_space<vmem>>, %arg6: memref<128x128xbf16, #tpu.memory_space<vmem>>, %arg7: memref<1x128xf32, #tpu.memory_space<vmem>>, %arg8: memref<128x128xbf16, #tpu.memory_space<vmem>>, %arg9: memref<1x128xf32, #tpu.memory_space<vmem>>, %arg10: memref<16x128xbf16, #tpu.memory_space<vmem>>) attributes {dimension_semantics = [#tpu.dimension_semantics<parallel>], iteration_bounds = array<i64: 1>, scalar_prefetch = 0 : i64, scratch_operands = 0 : i64, tpu.core_type = #tpu.core_type<tc>, window_params = [{transform_indices = @transform_0, window_bounds = array<i64: 16, 128>}, {pipeline_mode = #tpu.pipeline_mode<synchronous>, transform_indices = @transform_1, window_bounds = array<i64: 128, 128>}, {pipeline_mode = #tpu.pipeline_mode<synchronous>, transform_indices = @transform_2, window_bounds = array<i64: 1, 128>}, {pipeline_mode = #tpu.pipeline_mode<synchronous>, transform_indices = @transform_3, window_bounds = array<i64: 128, 128>}, {pipeline_mode = #tpu.pipeline_mode<synchronous>, transform_indices = @transform_4, window_bounds = array<i64: 1, 128>}, {pipeline_mode = #tpu.pipeline_mode<synchronous>, transform_indices = @transform_5, window_bounds = array<i64: 128, 128>}, {pipeline_mode = #tpu.pipeline_mode<synchronous>, transform_indices = @transform_6, window_bounds = array<i64: 1, 128>}, {pipeline_mode = #tpu.pipeline_mode<synchronous>, transform_indices = @transform_7, window_bounds = array<i64: 128, 128>}, {pipeline_mode = #tpu.pipeline_mode<synchronous>, transform_indices = @transform_8, window_bounds = array<i64: 1, 128>}, {transform_indices = @transform_9, window_bounds = array<i64: 16, 128>}]} {
    %c0 = arith.constant 0 : index
    %c0_0 = arith.constant 0 : index
    %0 = vector.load %arg1[%c0, %c0_0] : memref<16x128xf32, #tpu.memory_space<vmem>>, vector<16x128xf32>
    %1 = arith.truncf %0 : vector<16x128xf32> to vector<16x128xbf16>
    %c0_1 = arith.constant 0 : index
    %c0_2 = arith.constant 0 : index
    %2 = vector.load %arg2[%c0_1, %c0_2] : memref<128x128xbf16, #tpu.memory_space<vmem>>, vector<128x128xbf16>
    %cst = arith.constant dense<0.000000e+00> : vector<16x128xf32>
    %3 = tpu.matmul %1, %2, %cst {dimension_numbers = #tpu.dot_dimension_numbers<[1], [0], [0], [1], [0, 0, 1, 1], [], []>} : vector<16x128xbf16>, vector<128x128xbf16>, vector<16x128xf32> -> vector<16x128xf32>
    %c0_3 = arith.constant 0 : index
    %c0_4 = arith.constant 0 : index
    %4 = vector.load %arg3[%c0_3, %c0_4] : memref<1x128xf32, #tpu.memory_space<vmem>>, vector<1x128xf32>
    %5 = vector.broadcast %4 : vector<1x128xf32> to vector<16x128xf32>
    %6 = arith.addf %3, %5 : vector<16x128xf32>
    %cst_5 = arith.constant 0.000000e+00 : f32
    %7 = vector.broadcast %cst_5 : f32 to vector<16x128xf32>
    %8 = arith.maximumf %6, %7 : vector<16x128xf32>
    %9 = arith.truncf %8 : vector<16x128xf32> to vector<16x128xbf16>
    %c0_6 = arith.constant 0 : index
    %c0_7 = arith.constant 0 : index
    %10 = vector.load %arg4[%c0_6, %c0_7] : memref<128x128xbf16, #tpu.memory_space<vmem>>, vector<128x128xbf16>
    %cst_8 = arith.constant dense<0.000000e+00> : vector<16x128xf32>
    %11 = tpu.matmul %9, %10, %cst_8 {dimension_numbers = #tpu.dot_dimension_numbers<[1], [0], [0], [1], [0, 0, 1, 1], [], []>} : vector<16x128xbf16>, vector<128x128xbf16>, vector<16x128xf32> -> vector<16x128xf32>
    %c0_9 = arith.constant 0 : index
    %c0_10 = arith.constant 0 : index
    %12 = vector.load %arg5[%c0_9, %c0_10] : memref<1x128xf32, #tpu.memory_space<vmem>>, vector<1x128xf32>
    %13 = vector.broadcast %12 : vector<1x128xf32> to vector<16x128xf32>
    %14 = arith.addf %11, %13 : vector<16x128xf32>
    %cst_11 = arith.constant 0.000000e+00 : f32
    %15 = vector.broadcast %cst_11 : f32 to vector<16x128xf32>
    %16 = arith.maximumf %14, %15 : vector<16x128xf32>
    %17 = arith.truncf %16 : vector<16x128xf32> to vector<16x128xbf16>
    %c0_12 = arith.constant 0 : index
    %c0_13 = arith.constant 0 : index
    %18 = vector.load %arg6[%c0_12, %c0_13] : memref<128x128xbf16, #tpu.memory_space<vmem>>, vector<128x128xbf16>
    %cst_14 = arith.constant dense<0.000000e+00> : vector<16x128xf32>
    %19 = tpu.matmul %17, %18, %cst_14 {dimension_numbers = #tpu.dot_dimension_numbers<[1], [0], [0], [1], [0, 0, 1, 1], [], []>} : vector<16x128xbf16>, vector<128x128xbf16>, vector<16x128xf32> -> vector<16x128xf32>
    %c0_15 = arith.constant 0 : index
    %c0_16 = arith.constant 0 : index
    %20 = vector.load %arg7[%c0_15, %c0_16] : memref<1x128xf32, #tpu.memory_space<vmem>>, vector<1x128xf32>
    %21 = vector.broadcast %20 : vector<1x128xf32> to vector<16x128xf32>
    %22 = arith.addf %19, %21 : vector<16x128xf32>
    %cst_17 = arith.constant 0.000000e+00 : f32
    %23 = vector.broadcast %cst_17 : f32 to vector<16x128xf32>
    %24 = arith.maximumf %22, %23 : vector<16x128xf32>
    %25 = arith.truncf %24 : vector<16x128xf32> to vector<16x128xbf16>
    %c0_18 = arith.constant 0 : index
    %c0_19 = arith.constant 0 : index
    %26 = vector.load %arg8[%c0_18, %c0_19] : memref<128x128xbf16, #tpu.memory_space<vmem>>, vector<128x128xbf16>
    %cst_20 = arith.constant dense<0.000000e+00> : vector<16x128xf32>
    %27 = tpu.matmul %25, %26, %cst_20 {dimension_numbers = #tpu.dot_dimension_numbers<[1], [0], [0], [1], [0, 0, 1, 1], [], []>} : vector<16x128xbf16>, vector<128x128xbf16>, vector<16x128xf32> -> vector<16x128xf32>
    %c0_21 = arith.constant 0 : index
    %c0_22 = arith.constant 0 : index
    %28 = vector.load %arg9[%c0_21, %c0_22] : memref<1x128xf32, #tpu.memory_space<vmem>>, vector<1x128xf32>
    %29 = vector.broadcast %28 : vector<1x128xf32> to vector<16x128xf32>
    %30 = arith.addf %27, %29 : vector<16x128xf32>
    %31 = arith.truncf %30 : vector<16x128xf32> to vector<16x128xbf16>
    %c0_23 = arith.constant 0 : index
    %c0_24 = arith.constant 0 : index
    %32 = vector.load %arg10[%c0_23, %c0_24] : memref<16x128xbf16, #tpu.memory_space<vmem>>, vector<16x128xbf16>
    tpu.vector_store %arg10[%c0_23, %c0_24], %31 {strides = array<i32>} : memref<16x128xbf16, #tpu.memory_space<vmem>>, vector<16x128xbf16>,
    return
  }
  func.func @transform_0(%arg0: i32) -> (i32, i32) {
    %c0_i32 = arith.constant 0 : i32
    %c0_i32_0 = arith.constant 0 : i32
    return %arg0, %c0_i32 : i32, i32
  }
  func.func @transform_1(%arg0: i32) -> (i32, i32) {
    %c0_i32 = arith.constant 0 : i32
    %c0_i32_0 = arith.constant 0 : i32
    %c0_i32_1 = arith.constant 0 : i32
    return %c0_i32, %c0_i32_0 : i32, i32
  }
  func.func @transform_2(%arg0: i32) -> (i32, i32) {
    %c0_i32 = arith.constant 0 : i32
    %c0_i32_0 = arith.constant 0 : i32
    %c0_i32_1 = arith.constant 0 : i32
    return %c0_i32, %c0_i32_0 : i32, i32
  }
  func.func @transform_3(%arg0: i32) -> (i32, i32) {
    %c0_i32 = arith.constant 0 : i32
    %c0_i32_0 = arith.constant 0 : i32
    %c0_i32_1 = arith.constant 0 : i32
    return %c0_i32, %c0_i32_0 : i32, i32
  }
  func.func @transform_4(%arg0: i32) -> (i32, i32) {
    %c0_i32 = arith.constant 0 : i32
    %c0_i32_0 = arith.constant 0 : i32
    %c0_i32_1 = arith.constant 0 : i32
    return %c0_i32, %c0_i32_0 : i32, i32
  }
  func.func @transform_5(%arg0: i32) -> (i32, i32) {
    %c0_i32 = arith.constant 0 : i32
    %c0_i32_0 = arith.constant 0 : i32
    %c0_i32_1 = arith.constant 0 : i32
    return %c0_i32, %c0_i32_0 : i32, i32
  }
  func.func @transform_6(%arg0: i32) -> (i32, i32) {
    %c0_i32 = arith.constant 0 : i32
    %c0_i32_0 = arith.constant 0 : i32
    %c0_i32_1 = arith.constant 0 : i32
    return %c0_i32, %c0_i32_0 : i32, i32
  }
  func.func @transform_7(%arg0: i32) -> (i32, i32) {
    %c0_i32 = arith.constant 0 : i32
    %c0_i32_0 = arith.constant 0 : i32
    %c0_i32_1 = arith.constant 0 : i32
    return %c0_i32, %c0_i32_0 : i32, i32
  }
  func.func @transform_8(%arg0: i32) -> (i32, i32) {
    %c0_i32 = arith.constant 0 : i32
    %c0_i32_0 = arith.constant 0 : i32
    %c0_i32_1 = arith.constant 0 : i32
    return %c0_i32, %c0_i32_0 : i32, i32
  }
  func.func @transform_9(%arg0: i32) -> (i32, i32) {
    %c0_i32 = arith.constant 0 : i32
    %c0_i32_0 = arith.constant 0 : i32
    return %arg0, %c0_i32 : i32, i32
  }
}

</mosaic_0001>

<llo_original>
// kernel: _mlp_forward_pallas.1
$region0: #{_mlp_forward_pallas.1}
  #allocation0 [shape = 'u32[]', space=smem, size = 0x4, offset = 0x4, fixed_abs, tag = 'smem constant byte address 0x4 - core index']
  #allocation1 [shape = 'u32[144,128]{1,0:T(1,128)}', space=vmem, size = 0x12000, scoped, tag = 'internal scratch']
  %s0 = inlined_call_operand.vmem [shape: f32[16,128], index: 0, kind: input, shape index: {}]
  %s1 = inlined_call_operand.hbm [shape: bf16[128,128], index: 1, kind: input, shape index: {}]
  %s2 = inlined_call_operand.vmem [shape: f32[1,128], index: 2, kind: input, shape index: {}]
  %s3 = inlined_call_operand.hbm [shape: bf16[128,128], index: 3, kind: input, shape index: {}]
  %s4 = inlined_call_operand.vmem [shape: f32[1,128], index: 4, kind: input, shape index: {}]
  %s5 = inlined_call_operand.hbm [shape: bf16[128,128], index: 5, kind: input, shape index: {}]
  %s6 = inlined_call_operand.vmem [shape: f32[1,128], index: 6, kind: input, shape index: {}]
  %s7 = inlined_call_operand.hbm [shape: bf16[128,128], index: 7, kind: input, shape index: {}]
  %s8 = inlined_call_operand.vmem [shape: f32[1,128], index: 8, kind: input, shape index: {}]
  %s9 = inlined_call_operand.vmem [shape: bf16[16,128], index: 9, kind: output, shape index: {}]
  %s10 = sld [smem:[#allocation0]]
  $region62: #{_mlp_forward_pallas.1} parent=0
    _
  %s12 = ssub.s32 1, %s10
  %s13 = scalar_select 0, %s12, %s10
  $region1: #{_mlp_forward_pallas.1} parent=0
    #allocation2 [shape = 'u8[32768]{0}', space=vmem, size = 0x8000, scoped, tag = 'input window, operand 1, single buffered']
    #allocation3 [shape = 's32[1]{0}', space=sflag, size = 0x4, scoped, tag = 'scoped memory for _mlp_forward_pallas.1']
    #allocation4 [shape = 'u8[32768]{0}', space=vmem, size = 0x8000, scoped, tag = 'input window, operand 3, single buffered']
    #allocation5 [shape = 's32[1]{0}', space=sflag, size = 0x4, scoped, tag = 'scoped memory for _mlp_forward_pallas.1']
    #allocation6 [shape = 'u8[32768]{0}', space=vmem, size = 0x8000, scoped, tag = 'input window, operand 5, single buffered']
    #allocation7 [shape = 'u8[32768]{0}', space=vmem, size = 0x8000, scoped, tag = 'input window, operand 7, single buffered']
    #allocation8 [shape = 's32[1]{0}', space=sflag, size = 0x4, scoped, tag = 'scoped memory for _mlp_forward_pallas.1']
    %14 = vsyncpa [#allocation3], 0
    %15 = vsyncpa [#allocation5], 0
    %16 = vsyncpa [#allocation8], 0
    // Predicated region
    $region2: #{_mlp_forward_pallas.1} parent=1 // pred_check
      _
    $region3: #{_mlp_forward_pallas.1} parent=1 // pred_check_branch
      %18 = sbr.rel (0) target = $region5
    $region4: #{_mlp_forward_pallas.1} parent=1 // pred_region
      _
    $region5: #{_mlp_forward_pallas.1} parent=1 // pred_fallthru
      _
    // Predicated region
    $region6: #{_mlp_forward_pallas.1} parent=1 // pred_check
      _
    $region7: #{_mlp_forward_pallas.1} parent=1 // pred_check_branch
      %20 = sbr.rel (0) target = $region9
    $region8: #{_mlp_forward_pallas.1} parent=1 // pred_region
      %s22 = ssub.s32 1024, 1024
      %23 = vsyncadd [#allocation3], %s22
      %s24 = sshll.u32 [#allocation2], 4
      %s25 = int_to_ptr.vmem [resolvable:$true] %s24
      %30 = dma.hbm_to_vmem [thread:$0]  %s1, 1024, %s25, [#allocation3], 64, 64, 4
    $region9: #{_mlp_forward_pallas.1} parent=1 // pred_fallthru
      _
    // Predicated region
    $region10: #{_mlp_forward_pallas.1} parent=1 // pred_check
      _
    $region11: #{_mlp_forward_pallas.1} parent=1 // pred_check_branch
      %32 = sbr.rel (0) target = $region13
    $region12: #{_mlp_forward_pallas.1} parent=1 // pred_region
      _
    $region13: #{_mlp_forward_pallas.1} parent=1 // pred_fallthru
      _
    // Predicated region
    $region14: #{_mlp_forward_pallas.1} parent=1 // pred_check
      _
    $region15: #{_mlp_forward_pallas.1} parent=1 // pred_check_branch
      %34 = sbr.rel (0) target = $region17
    $region16: #{_mlp_forward_pallas.1} parent=1 // pred_region
      %s36 = ssub.s32 1024, 1024
      %37 = vsyncadd [#allocation5], %s36
      %s38 = sshll.u32 [#allocation4], 4
      %s39 = int_to_ptr.vmem [resolvable:$true] %s38
      %44 = dma.hbm_to_vmem [thread:$0]  %s3, 1024, %s39, [#allocation5], 64, 64, 4
    $region17: #{_mlp_forward_pallas.1} parent=1 // pred_fallthru
      _
    // Predicated region
    $region18: #{_mlp_forward_pallas.1} parent=1 // pred_check
      _
    $region19: #{_mlp_forward_pallas.1} parent=1 // pred_check_branch
      %46 = sbr.rel (0) target = $region21
    $region20: #{_mlp_forward_pallas.1} parent=1 // pred_region
      _
    $region21: #{_mlp_forward_pallas.1} parent=1 // pred_fallthru
      _
    // Predicated region
    $region22: #{_mlp_forward_pallas.1} parent=1 // pred_check
      _
    $region23: #{_mlp_forward_pallas.1} parent=1 // pred_check_branch
      %48 = sbr.rel (0) target = $region25
    $region24: #{_mlp_forward_pallas.1} parent=1 // pred_region
      %s50 = ssub.s32 1024, 1024
      %51 = vsyncadd [#allocation5], %s50
      %s52 = sshll.u32 [#allocation6], 4
      %s53 = int_to_ptr.vmem [resolvable:$true] %s52
      %58 = dma.hbm_to_vmem [thread:$0]  %s5, 1024, %s53, [#allocation5], 64, 64, 4
    $region25: #{_mlp_forward_pallas.1} parent=1 // pred_fallthru
      _
    // Predicated region
    $region26: #{_mlp_forward_pallas.1} parent=1 // pred_check
      _
    $region27: #{_mlp_forward_pallas.1} parent=1 // pred_check_branch
      %60 = sbr.rel (0) target = $region29
    $region28: #{_mlp_forward_pallas.1} parent=1 // pred_region
      _
    $region29: #{_mlp_forward_pallas.1} parent=1 // pred_fallthru
      _
    // Predicated region
    $region30: #{_mlp_forward_pallas.1} parent=1 // pred_check
      _
    $region31: #{_mlp_forward_pallas.1} parent=1 // pred_check_branch
      %62 = sbr.rel (0) target = $region33
    $region32: #{_mlp_forward_pallas.1} parent=1 // pred_region
      %s64 = ssub.s32 1024, 1024
      %65 = vsyncadd [#allocation8], %s64
      %s66 = sshll.u32 [#allocation7], 4
      %s67 = int_to_ptr.vmem [resolvable:$true] %s66
      %72 = dma.hbm_to_vmem [thread:$0]  %s7, 1024, %s67, [#allocation8], 64, 64, 4
    $region33: #{_mlp_forward_pallas.1} parent=1 // pred_fallthru
      _
    // Predicated region
    $region34: #{_mlp_forward_pallas.1} parent=1 // pred_check
      _
    $region35: #{_mlp_forward_pallas.1} parent=1 // pred_check_branch
      %74 = sbr.rel (0) target = $region37
    $region36: #{_mlp_forward_pallas.1} parent=1 // pred_region
      _
    $region37: #{_mlp_forward_pallas.1} parent=1 // pred_fallthru
      _
    // Predicated region
    $region38: #{_mlp_forward_pallas.1} parent=1 // pred_check
      _
    $region39: #{_mlp_forward_pallas.1} parent=1 // pred_check_branch
      %76 = sbr.rel (0) target = $region41
    $region40: #{_mlp_forward_pallas.1} parent=1 // pred_region
      %77 = dma.done [#allocation3], 1024
    $region41: #{_mlp_forward_pallas.1} parent=1 // pred_fallthru
      _
    // Predicated region
    $region42: #{_mlp_forward_pallas.1} parent=1 // pred_check
      _
    $region43: #{_mlp_forward_pallas.1} parent=1 // pred_check_branch
      %79 = sbr.rel (0) target = $region45
    $region44: #{_mlp_forward_pallas.1} parent=1 // pred_region
      %80 = dma.done [#allocation5], 1024
    $region45: #{_mlp_forward_pallas.1} parent=1 // pred_fallthru
      _
    // Predicated region
    $region46: #{_mlp_forward_pallas.1} parent=1 // pred_check
      _
    $region47: #{_mlp_forward_pallas.1} parent=1 // pred_check_branch
      %82 = sbr.rel (0) target = $region49
    $region48: #{_mlp_forward_pallas.1} parent=1 // pred_region
      %83 = dma.done [#allocation5], 1024
    $region49: #{_mlp_forward_pallas.1} parent=1 // pred_fallthru
      _
    // Predicated region
    $region50: #{_mlp_forward_pallas.1} parent=1 // pred_check
      _
    $region51: #{_mlp_forward_pallas.1} parent=1 // pred_check_branch
      %85 = sbr.rel (0) target = $region53
    $region52: #{_mlp_forward_pallas.1} parent=1 // pred_region
      %86 = dma.done [#allocation8], 1024
    $region53: #{_mlp_forward_pallas.1} parent=1 // pred_fallthru
      _
    %v88 = vld [vmem:[%s0] sm:$0xff]
    %v89 = vld [vmem:[%s0 + $0x8] sm:$0xff]
    %v90 = vpack.c.bf16 %v89, %v88
    %v91 = vld [vmem:[#allocation2] sm:$0xf]
    %v92 = vld [vmem:[#allocation2 + $0x4] sm:$0xf]
    %v93 = vld [vmem:[#allocation2 + $0x8] sm:$0xf]
    %v94 = vld [vmem:[#allocation2 + $0xc] sm:$0xf]
    %v95 = vld [vmem:[#allocation2 + $0x10] sm:$0xf]
    %v96 = vld [vmem:[#allocation2 + $0x14] sm:$0xf]
    %v97 = vld [vmem:[#allocation2 + $0x18] sm:$0xf]
    %v98 = vld [vmem:[#allocation2 + $0x1c] sm:$0xf]
    %v99 = vld [vmem:[#allocation2 + $0x20] sm:$0xf]
    %v100 = vld [vmem:[#allocation2 + $0x24] sm:$0xf]
    %v101 = vld [vmem:[#allocation2 + $0x28] sm:$0xf]
    %v102 = vld [vmem:[#allocation2 + $0x2c] sm:$0xf]
    %v103 = vld [vmem:[#allocation2 + $0x30] sm:$0xf]
    %v104 = vld [vmem:[#allocation2 + $0x34] sm:$0xf]
    %v105 = vld [vmem:[#allocation2 + $0x38] sm:$0xf]
    %v106 = vld [vmem:[#allocation2 + $0x3c] sm:$0xf]
    %v107 = vld [vmem:[%s2] sm:$0x1]
    %v109 = vlaneseq
    %v110 = vshrl.u32 %v109, 7
    %v111 = vsub.s32 0, %v110
    %v112 = vrot.slane %v107, %v111
    %v130 = vunpack.c.l.b16 %v91
    %v131 = vunpack.c.l.b16 %v92
    %v132 = vunpack.c.l.b16 %v93
    %v133 = vunpack.c.l.b16 %v94
    %v134 = vunpack.c.l.b16 %v95
    %v135 = vunpack.c.l.b16 %v96
    %v136 = vunpack.c.l.b16 %v97
    %v137 = vunpack.c.l.b16 %v98
    %v138 = vunpack.c.l.b16 %v99
    %v139 = vunpack.c.l.b16 %v100
    %v140 = vunpack.c.l.b16 %v101
    %v141 = vunpack.c.l.b16 %v102
    %v142 = vunpack.c.l.b16 %v103
    %v143 = vunpack.c.l.b16 %v104
    %v144 = vunpack.c.l.b16 %v105
    %v145 = vunpack.c.l.b16 %v106
    %v146 = vpack.c.b16 %v131, %v130
    %v147 = vpack.c.b16 %v133, %v132
    %v148 = vpack.c.b16 %v135, %v134
    %v149 = vpack.c.b16 %v137, %v136
    %v150 = vpack.c.b16 %v139, %v138
    %v151 = vpack.c.b16 %v141, %v140
    %v152 = vpack.c.b16 %v143, %v142
    %v153 = vpack.c.b16 %v145, %v144
    %162 = vmatprep.subr.bf16.mxu0 0
    %163 = vmatpush1.bf16.msra.mxu0 %v146
    %164 = vmatprep.subr.bf16.mxu0 0
    %165 = vmatpush1.bf16.msra.mxu0 %v147
    %166 = vmatprep.subr.bf16.mxu0 0
    %167 = vmatpush1.bf16.msra.mxu0 %v148
    %168 = vmatprep.subr.bf16.mxu0 0
    %169 = vmatpush1.bf16.msra.mxu0 %v149
    %170 = vmatprep.subr.bf16.mxu0 0
    %171 = vmatpush1.bf16.msra.mxu0 %v150
    %172 = vmatprep.subr.bf16.mxu0 0
    %173 = vmatpush1.bf16.msra.mxu0 %v151
    %174 = vmatprep.subr.bf16.mxu0 0
    %175 = vmatpush1.bf16.msra.mxu0 %v152
    %176 = vmatprep.subr.bf16.mxu0 0
    %177 = vmatpush1.bf16.msra.mxu0 %v153
    %178 = vmatprep.subr.bf16.mxu0 0
    %179 = vmatpush1.bf16.msra.mxu0 0
    %180 = vmatprep.subr.bf16.mxu0 0
    %181 = vmatpush1.bf16.msra.mxu0 0
    %182 = vmatprep.subr.bf16.mxu0 0
    %183 = vmatpush1.bf16.msra.mxu0 0
    %184 = vmatprep.subr.bf16.mxu0 0
    %185 = vmatpush1.bf16.msra.mxu0 0
    %186 = vmatprep.subr.bf16.mxu0 0
    %187 = vmatpush1.bf16.msra.mxu0 0
    %188 = vmatprep.subr.bf16.mxu0 0
    %189 = vmatpush1.bf16.msra.mxu0 0
    %190 = vmatprep.subr.bf16.mxu0 0
    %191 = vmatpush1.bf16.msra.mxu0 0
    %192 = vmatprep.subr.bf16.mxu0 0
    %193 = vmatpush1.bf16.msra.mxu0 0
    %194 = vmatprep.mubr.bf16.mxu0 0
    %195 = vmatmul.mubr.bf16.gmra.mrb[0].mxu0 %v90
    %v196 = vpop.f32.mrb[0].mxu0
    %v197 = vadd.f32 %v112, %v196
    %v198 = vpop.f32.mrb[0].mxu0
    %v199 = vpop.f32.mrb[0].mxu0
    %v200 = vadd.f32 %v112, %v199
    %v201 = vpop.f32.mrb[0].mxu0
    %202 = vdwg.mxu0
    %v203 = vmax.f32 %v197, 0.0
    %v204 = vmax.f32 %v200, 0.0
    %v205 = vpack.c.bf16 %v204, %v203
    %v206 = vld [vmem:[#allocation4] sm:$0xf]
    %v207 = vld [vmem:[#allocation4 + $0x4] sm:$0xf]
    %v208 = vld [vmem:[#allocation4 + $0x8] sm:$0xf]
    %v209 = vld [vmem:[#allocation4 + $0xc] sm:$0xf]
    %v210 = vld [vmem:[#allocation4 + $0x10] sm:$0xf]
    %v211 = vld [vmem:[#allocation4 + $0x14] sm:$0xf]
    %v212 = vld [vmem:[#allocation4 + $0x18] sm:$0xf]
    %v213 = vld [vmem:[#allocation4 + $0x1c] sm:$0xf]
    %v214 = vld [vmem:[#allocation4 + $0x20] sm:$0xf]
    %v215 = vld [vmem:[#allocation4 + $0x24] sm:$0xf]
    %v216 = vld [vmem:[#allocation4 + $0x28] sm:$0xf]
    %v217 = vld [vmem:[#allocation4 + $0x2c] sm:$0xf]
    %v218 = vld [vmem:[#allocation4 + $0x30] sm:$0xf]
    %v219 = vld [vmem:[#allocation4 + $0x34] sm:$0xf]
    %v220 = vld [vmem:[#allocation4 + $0x38] sm:$0xf]
    %v221 = vld [vmem:[#allocation4 + $0x3c] sm:$0xf]
    %v222 = vld [vmem:[%s4] sm:$0x1]
    %v224 = vlaneseq
    %v225 = vshrl.u32 %v224, 7
    %v226 = vsub.s32 0, %v225
    %v227 = vrot.slane %v222, %v226
    %v245 = vunpack.c.l.b16 %v206
    %v246 = vunpack.c.l.b16 %v207
    %v247 = vunpack.c.l.b16 %v208
    %v248 = vunpack.c.l.b16 %v209
    %v249 = vunpack.c.l.b16 %v210
    %v250 = vunpack.c.l.b16 %v211
    %v251 = vunpack.c.l.b16 %v212
    %v252 = vunpack.c.l.b16 %v213
    %v253 = vunpack.c.l.b16 %v214
    %v254 = vunpack.c.l.b16 %v215
    %v255 = vunpack.c.l.b16 %v216
    %v256 = vunpack.c.l.b16 %v217
    %v257 = vunpack.c.l.b16 %v218
    %v258 = vunpack.c.l.b16 %v219
    %v259 = vunpack.c.l.b16 %v220
    %v260 = vunpack.c.l.b16 %v221
    %v261 = vpack.c.b16 %v246, %v245
    %v262 = vpack.c.b16 %v248, %v247
    %v263 = vpack.c.b16 %v250, %v249
    %v264 = vpack.c.b16 %v252, %v251
    %v265 = vpack.c.b16 %v254, %v253
    %v266 = vpack.c.b16 %v256, %v255
    %v267 = vpack.c.b16 %v258, %v257
    %v268 = vpack.c.b16 %v260, %v259
    %277 = vmatprep.subr.bf16.mxu0 0
    %278 = vmatpush1.bf16.msra.mxu0 %v261
    %279 = vmatprep.subr.bf16.mxu0 0
    %280 = vmatpush1.bf16.msra.mxu0 %v262
    %281 = vmatprep.subr.bf16.mxu0 0
    %282 = vmatpush1.bf16.msra.mxu0 %v263
    %283 = vmatprep.subr.bf16.mxu0 0
    %284 = vmatpush1.bf16.msra.mxu0 %v264
    %285 = vmatprep.subr.bf16.mxu0 0
    %286 = vmatpush1.bf16.msra.mxu0 %v265
    %287 = vmatprep.subr.bf16.mxu0 0
    %288 = vmatpush1.bf16.msra.mxu0 %v266
    %289 = vmatprep.subr.bf16.mxu0 0
    %290 = vmatpush1.bf16.msra.mxu0 %v267
    %291 = vmatprep.subr.bf16.mxu0 0
    %292 = vmatpush1.bf16.msra.mxu0 %v268
    %293 = vmatprep.subr.bf16.mxu0 0
    %294 = vmatpush1.bf16.msra.mxu0 0
    %295 = vmatprep.subr.bf16.mxu0 0
    %296 = vmatpush1.bf16.msra.mxu0 0
    %297 = vmatprep.subr.bf16.mxu0 0
    %298 = vmatpush1.bf16.msra.mxu0 0
    %299 = vmatprep.subr.bf16.mxu0 0
    %300 = vmatpush1.bf16.msra.mxu0 0
    %301 = vmatprep.subr.bf16.mxu0 0
    %302 = vmatpush1.bf16.msra.mxu0 0
    %303 = vmatprep.subr.bf16.mxu0 0
    %304 = vmatpush1.bf16.msra.mxu0 0
    %305 = vmatprep.subr.bf16.mxu0 0
    %306 = vmatpush1.bf16.msra.mxu0 0
    %307 = vmatprep.subr.bf16.mxu0 0
    %308 = vmatpush1.bf16.msra.mxu0 0
    %309 = vmatprep.mubr.bf16.mxu0 0
    %310 = vmatmul.mubr.bf16.gmra.mrb[0].mxu0 %v205
    %v311 = vpop.f32.mrb[0].mxu0
    %v312 = vadd.f32 %v227, %v311
    %v313 = vpop.f32.mrb[0].mxu0
    %v314 = vpop.f32.mrb[0].mxu0
    %v315 = vadd.f32 %v227, %v314
    %v316 = vpop.f32.mrb[0].mxu0
    %317 = vdwg.mxu0
    %v318 = vmax.f32 %v312, 0.0
    %v319 = vmax.f32 %v315, 0.0
    %v320 = vpack.c.bf16 %v319, %v318
    %v321 = vld [vmem:[#allocation6] sm:$0xf]
    %v322 = vld [vmem:[#allocation6 + $0x4] sm:$0xf]
    %v323 = vld [vmem:[#allocation6 + $0x8] sm:$0xf]
    %v324 = vld [vmem:[#allocation6 + $0xc] sm:$0xf]
    %v325 = vld [vmem:[#allocation6 + $0x10] sm:$0xf]
    %v326 = vld [vmem:[#allocation6 + $0x14] sm:$0xf]
    %v327 = vld [vmem:[#allocation6 + $0x18] sm:$0xf]
    %v328 = vld [vmem:[#allocation6 + $0x1c] sm:$0xf]
    %v329 = vld [vmem:[#allocation6 + $0x20] sm:$0xf]
    %v330 = vld [vmem:[#allocation6 + $0x24] sm:$0xf]
    %v331 = vld [vmem:[#allocation6 + $0x28] sm:$0xf]
    %v332 = vld [vmem:[#allocation6 + $0x2c] sm:$0xf]
    %v333 = vld [vmem:[#allocation6 + $0x30] sm:$0xf]
    %v334 = vld [vmem:[#allocation6 + $0x34] sm:$0xf]
    %v335 = vld [vmem:[#allocation6 + $0x38] sm:$0xf]
    %v336 = vld [vmem:[#allocation6 + $0x3c] sm:$0xf]
    %v337 = vld [vmem:[%s6] sm:$0x1]
    %v339 = vlaneseq
    %v340 = vshrl.u32 %v339, 7
    %v341 = vsub.s32 0, %v340
    %v342 = vrot.slane %v337, %v341
    %v360 = vunpack.c.l.b16 %v321
    %v361 = vunpack.c.l.b16 %v322
    %v362 = vunpack.c.l.b16 %v323
    %v363 = vunpack.c.l.b16 %v324
    %v364 = vunpack.c.l.b16 %v325
    %v365 = vunpack.c.l.b16 %v326
    %v366 = vunpack.c.l.b16 %v327
    %v367 = vunpack.c.l.b16 %v328
    %v368 = vunpack.c.l.b16 %v329
    %v369 = vunpack.c.l.b16 %v330
    %v370 = vunpack.c.l.b16 %v331
    %v371 = vunpack.c.l.b16 %v332
    %v372 = vunpack.c.l.b16 %v333
    %v373 = vunpack.c.l.b16 %v334
    %v374 = vunpack.c.l.b16 %v335
    %v375 = vunpack.c.l.b16 %v336
    %v376 = vpack.c.b16 %v361, %v360
    %v377 = vpack.c.b16 %v363, %v362
    %v378 = vpack.c.b16 %v365, %v364
    %v379 = vpack.c.b16 %v367, %v366
    %v380 = vpack.c.b16 %v369, %v368
    %v381 = vpack.c.b16 %v371, %v370
    %v382 = vpack.c.b16 %v373, %v372
    %v383 = vpack.c.b16 %v375, %v374
    %392 = vmatprep.subr.bf16.mxu0 0
    %393 = vmatpush1.bf16.msra.mxu0 %v376
    %394 = vmatprep.subr.bf16.mxu0 0
    %395 = vmatpush1.bf16.msra.mxu0 %v377
    %396 = vmatprep.subr.bf16.mxu0 0
    %397 = vmatpush1.bf16.msra.mxu0 %v378
    %398 = vmatprep.subr.bf16.mxu0 0
    %399 = vmatpush1.bf16.msra.mxu0 %v379
    %400 = vmatprep.subr.bf16.mxu0 0
    %401 = vmatpush1.bf16.msra.mxu0 %v380
    %402 = vmatprep.subr.bf16.mxu0 0
    %403 = vmatpush1.bf16.msra.mxu0 %v381
    %404 = vmatprep.subr.bf16.mxu0 0
    %405 = vmatpush1.bf16.msra.mxu0 %v382
    %406 = vmatprep.subr.bf16.mxu0 0
    %407 = vmatpush1.bf16.msra.mxu0 %v383
    %408 = vmatprep.subr.bf16.mxu0 0
    %409 = vmatpush1.bf16.msra.mxu0 0
    %410 = vmatprep.subr.bf16.mxu0 0
    %411 = vmatpush1.bf16.msra.mxu0 0
    %412 = vmatprep.subr.bf16.mxu0 0
    %413 = vmatpush1.bf16.msra.mxu0 0
    %414 = vmatprep.subr.bf16.mxu0 0
    %415 = vmatpush1.bf16.msra.mxu0 0
    %416 = vmatprep.subr.bf16.mxu0 0
    %417 = vmatpush1.bf16.msra.mxu0 0
    %418 = vmatprep.subr.bf16.mxu0 0
    %419 = vmatpush1.bf16.msra.mxu0 0
    %420 = vmatprep.subr.bf16.mxu0 0
    %421 = vmatpush1.bf16.msra.mxu0 0
    %422 = vmatprep.subr.bf16.mxu0 0
    %423 = vmatpush1.bf16.msra.mxu0 0
    %424 = vmatprep.mubr.bf16.mxu0 0
    %425 = vmatmul.mubr.bf16.gmra.mrb[0].mxu0 %v320
    %v426 = vpop.f32.mrb[0].mxu0
    %v427 = vadd.f32 %v342, %v426
    %v428 = vpop.f32.mrb[0].mxu0
    %v429 = vpop.f32.mrb[0].mxu0
    %v430 = vadd.f32 %v342, %v429
    %v431 = vpop.f32.mrb[0].mxu0
    %432 = vdwg.mxu0
    %v433 = vmax.f32 %v427, 0.0
    %v434 = vmax.f32 %v430, 0.0
    %v435 = vpack.c.bf16 %v434, %v433
    %v436 = vld [vmem:[#allocation7] sm:$0xf]
    %v437 = vld [vmem:[#allocation7 + $0x4] sm:$0xf]
    %v438 = vld [vmem:[#allocation7 + $0x8] sm:$0xf]
    %v439 = vld [vmem:[#allocation7 + $0xc] sm:$0xf]
    %v440 = vld [vmem:[#allocation7 + $0x10] sm:$0xf]
    %v441 = vld [vmem:[#allocation7 + $0x14] sm:$0xf]
    %v442 = vld [vmem:[#allocation7 + $0x18] sm:$0xf]
    %v443 = vld [vmem:[#allocation7 + $0x1c] sm:$0xf]
    %v444 = vld [vmem:[#allocation7 + $0x20] sm:$0xf]
    %v445 = vld [vmem:[#allocation7 + $0x24] sm:$0xf]
    %v446 = vld [vmem:[#allocation7 + $0x28] sm:$0xf]
    %v447 = vld [vmem:[#allocation7 + $0x2c] sm:$0xf]
    %v448 = vld [vmem:[#allocation7 + $0x30] sm:$0xf]
    %v449 = vld [vmem:[#allocation7 + $0x34] sm:$0xf]
    %v450 = vld [vmem:[#allocation7 + $0x38] sm:$0xf]
    %v451 = vld [vmem:[#allocation7 + $0x3c] sm:$0xf]
    %v452 = vld [vmem:[%s8] sm:$0x1]
    %v454 = vlaneseq
    %v455 = vshrl.u32 %v454, 7
    %v456 = vsub.s32 0, %v455
    %v457 = vrot.slane %v452, %v456
    %v475 = vunpack.c.l.b16 %v436
    %v476 = vunpack.c.l.b16 %v437
    %v477 = vunpack.c.l.b16 %v438
    %v478 = vunpack.c.l.b16 %v439
    %v479 = vunpack.c.l.b16 %v440
    %v480 = vunpack.c.l.b16 %v441
    %v481 = vunpack.c.l.b16 %v442
    %v482 = vunpack.c.l.b16 %v443
    %v483 = vunpack.c.l.b16 %v444
    %v484 = vunpack.c.l.b16 %v445
    %v485 = vunpack.c.l.b16 %v446
    %v486 = vunpack.c.l.b16 %v447
    %v487 = vunpack.c.l.b16 %v448
    %v488 = vunpack.c.l.b16 %v449
    %v489 = vunpack.c.l.b16 %v450
    %v490 = vunpack.c.l.b16 %v451
    %v491 = vpack.c.b16 %v476, %v475
    %v492 = vpack.c.b16 %v478, %v477
    %v493 = vpack.c.b16 %v480, %v479
    %v494 = vpack.c.b16 %v482, %v481
    %v495 = vpack.c.b16 %v484, %v483
    %v496 = vpack.c.b16 %v486, %v485
    %v497 = vpack.c.b16 %v488, %v487
    %v498 = vpack.c.b16 %v490, %v489
    %507 = vmatprep.subr.bf16.mxu0 0
    %508 = vmatpush1.bf16.msra.mxu0 %v491
    %509 = vmatprep.subr.bf16.mxu0 0
    %510 = vmatpush1.bf16.msra.mxu0 %v492
    %511 = vmatprep.subr.bf16.mxu0 0
    %512 = vmatpush1.bf16.msra.mxu0 %v493
    %513 = vmatprep.subr.bf16.mxu0 0
    %514 = vmatpush1.bf16.msra.mxu0 %v494
    %515 = vmatprep.subr.bf16.mxu0 0
    %516 = vmatpush1.bf16.msra.mxu0 %v495
    %517 = vmatprep.subr.bf16.mxu0 0
    %518 = vmatpush1.bf16.msra.mxu0 %v496
    %519 = vmatprep.subr.bf16.mxu0 0
    %520 = vmatpush1.bf16.msra.mxu0 %v497
    %521 = vmatprep.subr.bf16.mxu0 0
    %522 = vmatpush1.bf16.msra.mxu0 %v498
    %523 = vmatprep.subr.bf16.mxu0 0
    %524 = vmatpush1.bf16.msra.mxu0 0
    %525 = vmatprep.subr.bf16.mxu0 0
    %526 = vmatpush1.bf16.msra.mxu0 0
    %527 = vmatprep.subr.bf16.mxu0 0
    %528 = vmatpush1.bf16.msra.mxu0 0
    %529 = vmatprep.subr.bf16.mxu0 0
    %530 = vmatpush1.bf16.msra.mxu0 0
    %531 = vmatprep.subr.bf16.mxu0 0
    %532 = vmatpush1.bf16.msra.mxu0 0
    %533 = vmatprep.subr.bf16.mxu0 0
    %534 = vmatpush1.bf16.msra.mxu0 0
    %535 = vmatprep.subr.bf16.mxu0 0
    %536 = vmatpush1.bf16.msra.mxu0 0
    %537 = vmatprep.subr.bf16.mxu0 0
    %538 = vmatpush1.bf16.msra.mxu0 0
    %539 = vmatprep.mubr.bf16.mxu0 0
    %540 = vmatmul.mubr.bf16.gmra.mrb[0].mxu0 %v435
    %v541 = vpop.f32.mrb[0].mxu0
    %v542 = vadd.f32 %v457, %v541
    %v543 = vpop.f32.mrb[0].mxu0
    %v544 = vpop.f32.mrb[0].mxu0
    %v545 = vadd.f32 %v457, %v544
    %v546 = vpop.f32.mrb[0].mxu0
    %547 = vdwg.mxu0
    %v548 = vpack.c.bf16 %v545, %v542
    %v550 = vunpack.c.l.b16 %v548
    %v551 = vunpack.c.h.b16 %v548
    %v552 = vpack.c.b16 %v550, %v550
    %v553 = vpack.c.b16 %v551, %v551
    %556 = vst [vmem:[%s9] sm:$0xf] %v552
    %557 = vst [vmem:[%s9 + $0x4] sm:$0xf] %v553
    // Predicated region
    $region54: #{_mlp_forward_pallas.1} parent=1 // pred_check
      _
    $region55: #{_mlp_forward_pallas.1} parent=1 // pred_check_branch
      %559 = sbr.rel (0) target = $region57
    $region56: #{_mlp_forward_pallas.1} parent=1 // pred_region
      _
    $region57: #{_mlp_forward_pallas.1} parent=1 // pred_fallthru
      _
    // Predicated region
    $region58: #{_mlp_forward_pallas.1} parent=1 // pred_check
      _
    $region59: #{_mlp_forward_pallas.1} parent=1 // pred_check_branch
      %561 = sbr.rel (0) target = $region61
    $region60: #{_mlp_forward_pallas.1} parent=1 // pred_region
      _
    $region61: #{_mlp_forward_pallas.1} parent=1 // pred_fallthru
      _
    %562 = vsyncpa [#allocation3], 1
    %563 = vsyncpa [#allocation5], 1
    %564 = vsyncpa [#allocation8], 1

// kernel: _mlp_forward_pallas.1
$region0: #{_mlp_forward_pallas.1}
  #allocation0 [shape = 'u32[]', space=smem, size = 0x4, offset = 0x4, fixed_abs, tag = 'smem constant byte address 0x4 - core index']
  #allocation1 [shape = 'u32[144,128]{1,0:T(1,128)}', space=vmem, size = 0x12000, scoped, tag = 'internal scratch']
  %s0 = inlined_call_operand.vmem [shape: f32[16,128], index: 0, kind: input, shape index: {}]
  %s1 = inlined_call_operand.hbm [shape: bf16[128,128], index: 1, kind: input, shape index: {}]
  %s2 = inlined_call_operand.vmem [shape: f32[1,128], index: 2, kind: input, shape index: {}]
  %s3 = inlined_call_operand.hbm [shape: bf16[128,128], index: 3, kind: input, shape index: {}]
  %s4 = inlined_call_operand.vmem [shape: f32[1,128], index: 4, kind: input, shape index: {}]
  %s5 = inlined_call_operand.hbm [shape: bf16[128,128], index: 5, kind: input, shape index: {}]
  %s6 = inlined_call_operand.vmem [shape: f32[1,128], index: 6, kind: input, shape index: {}]
  %s7 = inlined_call_operand.hbm [shape: bf16[128,128], index: 7, kind: input, shape index: {}]
  %s8 = inlined_call_operand.vmem [shape: f32[1,128], index: 8, kind: input, shape index: {}]
  %s9 = inlined_call_operand.vmem [shape: bf16[16,128], index: 9, kind: output, shape index: {}]
  %s10 = sld [smem:[#allocation0]]
  $region62: #{_mlp_forward_pallas.1} parent=0
    _
  %s12 = ssub.s32 1, %s10
  %s13 = scalar_select 0, %s12, %s10
  $region1: #{_mlp_forward_pallas.1} parent=0
    #allocation2 [shape = 'u8[32768]{0}', space=vmem, size = 0x8000, scoped, tag = 'input window, operand 1, single buffered']
    #allocation3 [shape = 's32[1]{0}', space=sflag, size = 0x4, scoped, tag = 'scoped memory for _mlp_forward_pallas.1']
    #allocation4 [shape = 'u8[32768]{0}', space=vmem, size = 0x8000, scoped, tag = 'input window, operand 3, single buffered']
    #allocation5 [shape = 's32[1]{0}', space=sflag, size = 0x4, scoped, tag = 'scoped memory for _mlp_forward_pallas.1']
    #allocation6 [shape = 'u8[32768]{0}', space=vmem, size = 0x8000, scoped, tag = 'input window, operand 5, single buffered']
    #allocation7 [shape = 'u8[32768]{0}', space=vmem, size = 0x8000, scoped, tag = 'input window, operand 7, single buffered']
    #allocation8 [shape = 's32[1]{0}', space=sflag, size = 0x4, scoped, tag = 'scoped memory for _mlp_forward_pallas.1']
    %14 = vsyncpa [#allocation3], 0
    %15 = vsyncpa [#allocation5], 0
    %16 = vsyncpa [#allocation8], 0
    // Predicated region
    $region2: #{_mlp_forward_pallas.1} parent=1 // pred_check
      _
    $region3: #{_mlp_forward_pallas.1} parent=1 // pred_check_branch
      %18 = sbr.rel (0) target = $region5
    $region4: #{_mlp_forward_pallas.1} parent=1 // pred_region
      _
    $region5: #{_mlp_forward_pallas.1} parent=1 // pred_fallthru
      _
    // Predicated region
    $region6: #{_mlp_forward_pallas.1} parent=1 // pred_check
      _
    $region7: #{_mlp_forward_pallas.1} parent=1 // pred_check_branch
      %20 = sbr.rel (0) target = $region9
    $region8: #{_mlp_forward_pallas.1} parent=1 // pred_region
      %s22 = ssub.s32 1024, 1024
      %23 = vsyncadd [#allocation3], %s22
      %s24 = sshll.u32 [#allocation2], 4
      %s25 = int_to_ptr.vmem [resolvable:$true] %s24
      %30 = dma.hbm_to_vmem [thread:$0]  %s1, 1024, %s25, [#allocation3], 64, 64, 4
    $region9: #{_mlp_forward_pallas.1} parent=1 // pred_fallthru
      _
    // Predicated region
    $region10: #{_mlp_forward_pallas.1} parent=1 // pred_check
      _
    $region11: #{_mlp_forward_pallas.1} parent=1 // pred_check_branch
      %32 = sbr.rel (0) target = $region13
    $region12: #{_mlp_forward_pallas.1} parent=1 // pred_region
      _
    $region13: #{_mlp_forward_pallas.1} parent=1 // pred_fallthru
      _
    // Predicated region
    $region14: #{_mlp_forward_pallas.1} parent=1 // pred_check
      _
    $region15: #{_mlp_forward_pallas.1} parent=1 // pred_check_branch
      %34 = sbr.rel (0) target = $region17
    $region16: #{_mlp_forward_pallas.1} parent=1 // pred_region
      %s36 = ssub.s32 1024, 1024
      %37 = vsyncadd [#allocation5], %s36
      %s38 = sshll.u32 [#allocation4], 4
      %s39 = int_to_ptr.vmem [resolvable:$true] %s38
      %44 = dma.hbm_to_vmem [thread:$0]  %s3, 1024, %s39, [#allocation5], 64, 64, 4
    $region17: #{_mlp_forward_pallas.1} parent=1 // pred_fallthru
      _
    // Predicated region
    $region18: #{_mlp_forward_pallas.1} parent=1 // pred_check
      _
    $region19: #{_mlp_forward_pallas.1} parent=1 // pred_check_branch
      %46 = sbr.rel (0) target = $region21
    $region20: #{_mlp_forward_pallas.1} parent=1 // pred_region
      _
    $region21: #{_mlp_forward_pallas.1} parent=1 // pred_fallthru
      _
    // Predicated region
    $region22: #{_mlp_forward_pallas.1} parent=1 // pred_check
      _
    $region23: #{_mlp_forward_pallas.1} parent=1 // pred_check_branch
      %48 = sbr.rel (0) target = $region25
    $region24: #{_mlp_forward_pallas.1} parent=1 // pred_region
      %s50 = ssub.s32 1024, 1024
      %51 = vsyncadd [#allocation5], %s50
      %s52 = sshll.u32 [#allocation6], 4
      %s53 = int_to_ptr.vmem [resolvable:$true] %s52
      %58 = dma.hbm_to_vmem [thread:$0]  %s5, 1024, %s53, [#allocation5], 64, 64, 4
    $region25: #{_mlp_forward_pallas.1} parent=1 // pred_fallthru
      _
    // Predicated region
    $region26: #{_mlp_forward_pallas.1} parent=1 // pred_check
      _
    $region27: #{_mlp_forward_pallas.1} parent=1 // pred_check_branch
      %60 = sbr.rel (0) target = $region29
    $region28: #{_mlp_forward_pallas.1} parent=1 // pred_region
      _
    $region29: #{_mlp_forward_pallas.1} parent=1 // pred_fallthru
      _
    // Predicated region
    $region30: #{_mlp_forward_pallas.1} parent=1 // pred_check
      _
    $region31: #{_mlp_forward_pallas.1} parent=1 // pred_check_branch
      %62 = sbr.rel (0) target = $region33
    $region32: #{_mlp_forward_pallas.1} parent=1 // pred_region
      %s64 = ssub.s32 1024, 1024
      %65 = vsyncadd [#allocation8], %s64
      %s66 = sshll.u32 [#allocation7], 4
      %s67 = int_to_ptr.vmem [resolvable:$true] %s66
      %72 = dma.hbm_to_vmem [thread:$0]  %s7, 1024, %s67, [#allocation8], 64, 64, 4
    $region33: #{_mlp_forward_pallas.1} parent=1 // pred_fallthru
      _
    // Predicated region
    $region34: #{_mlp_forward_pallas.1} parent=1 // pred_check
      _
    $region35: #{_mlp_forward_pallas.1} parent=1 // pred_check_branch
      %74 = sbr.rel (0) target = $region37
    $region36: #{_mlp_forward_pallas.1} parent=1 // pred_region
      _
    $region37: #{_mlp_forward_pallas.1} parent=1 // pred_fallthru
      _
    // Predicated region
    $region38: #{_mlp_forward_pallas.1} parent=1 // pred_check
      _
    $region39: #{_mlp_forward_pallas.1} parent=1 // pred_check_branch
      %76 = sbr.rel (0) target = $region41
    $region40: #{_mlp_forward_pallas.1} parent=1 // pred_region
      %77 = dma.done [#allocation3], 1024
    $region41: #{_mlp_forward_pallas.1} parent=1 // pred_fallthru
      _
    // Predicated region
    $region42: #{_mlp_forward_pallas.1} parent=1 // pred_check
      _
    $region43: #{_mlp_forward_pallas.1} parent=1 // pred_check_branch
      %79 = sbr.rel (0) target = $region45
    $region44: #{_mlp_forward_pallas.1} parent=1 // pred_region
      %80 = dma.done [#allocation5], 1024
    $region45: #{_mlp_forward_pallas.1} parent=1 // pred_fallthru
      _
    // Predicated region
    $region46: #{_mlp_forward_pallas.1} parent=1 // pred_check
      _
    $region47: #{_mlp_forward_pallas.1} parent=1 // pred_check_branch
      %82 = sbr.rel (0) target = $region49
    $region48: #{_mlp_forward_pallas.1} parent=1 // pred_region
      %83 = dma.done [#allocation5], 1024
    $region49: #{_mlp_forward_pallas.1} parent=1 // pred_fallthru
      _
    // Predicated region
    $region50: #{_mlp_forward_pallas.1} parent=1 // pred_check
      _
    $region51: #{_mlp_forward_pallas.1} parent=1 // pred_check_branch
      %85 = sbr.rel (0) target = $region53
    $region52: #{_mlp_forward_pallas.1} parent=1 // pred_region
      %86 = dma.done [#allocation8], 1024
    $region53: #{_mlp_forward_pallas.1} parent=1 // pred_fallthru
      _
    %v88 = vld [vmem:[%s0] sm:$0xff]
    %v89 = vld [vmem:[%s0 + $0x8] sm:$0xff]
    %v90 = vpack.c.bf16 %v89, %v88
    %v91 = vld [vmem:[#allocation2] sm:$0xf]
    %v92 = vld [vmem:[#allocation2 + $0x4] sm:$0xf]
    %v93 = vld [vmem:[#allocation2 + $0x8] sm:$0xf]
    %v94 = vld [vmem:[#allocation2 + $0xc] sm:$0xf]
    %v95 = vld [vmem:[#allocation2 + $0x10] sm:$0xf]
    %v96 = vld [vmem:[#allocation2 + $0x14] sm:$0xf]
    %v97 = vld [vmem:[#allocation2 + $0x18] sm:$0xf]
    %v98 = vld [vmem:[#allocation2 + $0x1c] sm:$0xf]
    %v99 = vld [vmem:[#allocation2 + $0x20] sm:$0xf]
    %v100 = vld [vmem:[#allocation2 + $0x24] sm:$0xf]
    %v101 = vld [vmem:[#allocation2 + $0x28] sm:$0xf]
    %v102 = vld [vmem:[#allocation2 + $0x2c] sm:$0xf]
    %v103 = vld [vmem:[#allocation2 + $0x30] sm:$0xf]
    %v104 = vld [vmem:[#allocation2 + $0x34] sm:$0xf]
    %v105 = vld [vmem:[#allocation2 + $0x38] sm:$0xf]
    %v106 = vld [vmem:[#allocation2 + $0x3c] sm:$0xf]
    %v107 = vld [vmem:[%s2] sm:$0x1]
    %v109 = vlaneseq
    %v110 = vshrl.u32 %v109, 7
    %v111 = vsub.s32 0, %v110
    %v112 = vrot.slane %v107, %v111
    %v130 = vunpack.c.l.b16 %v91
    %v131 = vunpack.c.l.b16 %v92
    %v132 = vunpack.c.l.b16 %v93
    %v133 = vunpack.c.l.b16 %v94
    %v134 = vunpack.c.l.b16 %v95
    %v135 = vunpack.c.l.b16 %v96
    %v136 = vunpack.c.l.b16 %v97
    %v137 = vunpack.c.l.b16 %v98
    %v138 = vunpack.c.l.b16 %v99
    %v139 = vunpack.c.l.b16 %v100
    %v140 = vunpack.c.l.b16 %v101
    %v141 = vunpack.c.l.b16 %v102
    %v142 = vunpack.c.l.b16 %v103
    %v143 = vunpack.c.l.b16 %v104
    %v144 = vunpack.c.l.b16 %v105
    %v145 = vunpack.c.l.b16 %v106
    %v146 = vpack.c.b16 %v131, %v130
    %v147 = vpack.c.b16 %v133, %v132
    %v148 = vpack.c.b16 %v135, %v134
    %v149 = vpack.c.b16 %v137, %v136
    %v150 = vpack.c.b16 %v139, %v138
    %v151 = vpack.c.b16 %v141, %v140
    %v152 = vpack.c.b16 %v143, %v142
    %v153 = vpack.c.b16 %v145, %v144
    %162 = vmatprep.subr.bf16.mxu0 0
    %163 = vmatpush1.bf16.msra.mxu0 %v146
    %164 = vmatprep.subr.bf16.mxu0 0
    %165 = vmatpush1.bf16.msra.mxu0 %v147
    %166 = vmatprep.subr.bf16.mxu0 0
    %167 = vmatpush1.bf16.msra.mxu0 %v148
    %168 = vmatprep.subr.bf16.mxu0 0
    %169 = vmatpush1.bf16.msra.mxu0 %v149
    %170 = vmatprep.subr.bf16.mxu0 0
    %171 = vmatpush1.bf16.msra.mxu0 %v150
    %172 = vmatprep.subr.bf16.mxu0 0
    %173 = vmatpush1.bf16.msra.mxu0 %v151
    %174 = vmatprep.subr.bf16.mxu0 0
    %175 = vmatpush1.bf16.msra.mxu0 %v152
    %176 = vmatprep.subr.bf16.mxu0 0
    %177 = vmatpush1.bf16.msra.mxu0 %v153
    %178 = vmatprep.subr.bf16.mxu0 0
    %179 = vmatpush1.bf16.msra.mxu0 0
    %180 = vmatprep.subr.bf16.mxu0 0
    %181 = vmatpush1.bf16.msra.mxu0 0
    %182 = vmatprep.subr.bf16.mxu0 0
    %183 = vmatpush1.bf16.msra.mxu0 0
    %184 = vmatprep.subr.bf16.mxu0 0
    %185 = vmatpush1.bf16.msra.mxu0 0
    %186 = vmatprep.subr.bf16.mxu0 0
    %187 = vmatpush1.bf16.msra.mxu0 0
    %188 = vmatprep.subr.bf16.mxu0 0
    %189 = vmatpush1.bf16.msra.mxu0 0
    %190 = vmatprep.subr.bf16.mxu0 0
    %191 = vmatpush1.bf16.msra.mxu0 0
    %192 = vmatprep.subr.bf16.mxu0 0
    %193 = vmatpush1.bf16.msra.mxu0 0
    %194 = vmatprep.mubr.bf16.mxu0 0
    %195 = vmatmul.mubr.bf16.gmra.mrb[0].mxu0 %v90
    %v196 = vpop.f32.mrb[0].mxu0
    %v197 = vadd.f32 %v112, %v196
    %v198 = vpop.f32.mrb[0].mxu0
    %v199 = vpop.f32.mrb[0].mxu0
    %v200 = vadd.f32 %v112, %v199
    %v201 = vpop.f32.mrb[0].mxu0
    %202 = vdwg.mxu0
    %v203 = vmax.f32 %v197, 0.0
    %v204 = vmax.f32 %v200, 0.0
    %v205 = vpack.c.bf16 %v204, %v203
    %v206 = vld [vmem:[#allocation4] sm:$0xf]
    %v207 = vld [vmem:[#allocation4 + $0x4] sm:$0xf]
    %v208 = vld [vmem:[#allocation4 + $0x8] sm:$0xf]
    %v209 = vld [vmem:[#allocation4 + $0xc] sm:$0xf]
    %v210 = vld [vmem:[#allocation4 + $0x10] sm:$0xf]
    %v211 = vld [vmem:[#allocation4 + $0x14] sm:$0xf]
    %v212 = vld [vmem:[#allocation4 + $0x18] sm:$0xf]
    %v213 = vld [vmem:[#allocation4 + $0x1c] sm:$0xf]
    %v214 = vld [vmem:[#allocation4 + $0x20] sm:$0xf]
    %v215 = vld [vmem:[#allocation4 + $0x24] sm:$0xf]
    %v216 = vld [vmem:[#allocation4 + $0x28] sm:$0xf]
    %v217 = vld [vmem:[#allocation4 + $0x2c] sm:$0xf]
    %v218 = vld [vmem:[#allocation4 + $0x30] sm:$0xf]
    %v219 = vld [vmem:[#allocation4 + $0x34] sm:$0xf]
    %v220 = vld [vmem:[#allocation4 + $0x38] sm:$0xf]
    %v221 = vld [vmem:[#allocation4 + $0x3c] sm:$0xf]
    %v222 = vld [vmem:[%s4] sm:$0x1]
    %v224 = vlaneseq
    %v225 = vshrl.u32 %v224, 7
    %v226 = vsub.s32 0, %v225
    %v227 = vrot.slane %v222, %v226
    %v245 = vunpack.c.l.b16 %v206
    %v246 = vunpack.c.l.b16 %v207
    %v247 = vunpack.c.l.b16 %v208
    %v248 = vunpack.c.l.b16 %v209
    %v249 = vunpack.c.l.b16 %v210
    %v250 = vunpack.c.l.b16 %v211
    %v251 = vunpack.c.l.b16 %v212
    %v252 = vunpack.c.l.b16 %v213
    %v253 = vunpack.c.l.b16 %v214
    %v254 = vunpack.c.l.b16 %v215
    %v255 = vunpack.c.l.b16 %v216
    %v256 = vunpack.c.l.b16 %v217
    %v257 = vunpack.c.l.b16 %v218
    %v258 = vunpack.c.l.b16 %v219
    %v259 = vunpack.c.l.b16 %v220
    %v260 = vunpack.c.l.b16 %v221
    %v261 = vpack.c.b16 %v246, %v245
    %v262 = vpack.c.b16 %v248, %v247
    %v263 = vpack.c.b16 %v250, %v249
    %v264 = vpack.c.b16 %v252, %v251
    %v265 = vpack.c.b16 %v254, %v253
    %v266 = vpack.c.b16 %v256, %v255
    %v267 = vpack.c.b16 %v258, %v257
    %v268 = vpack.c.b16 %v260, %v259
    %277 = vmatprep.subr.bf16.mxu0 0
    %278 = vmatpush1.bf16.msra.mxu0 %v261
    %279 = vmatprep.subr.bf16.mxu0 0
    %280 = vmatpush1.bf16.msra.mxu0 %v262
    %281 = vmatprep.subr.bf16.mxu0 0
    %282 = vmatpush1.bf16.msra.mxu0 %v263
    %283 = vmatprep.subr.bf16.mxu0 0
    %284 = vmatpush1.bf16.msra.mxu0 %v264
    %285 = vmatprep.subr.bf16.mxu0 0
    %286 = vmatpush1.bf16.msra.mxu0 %v265
    %287 = vmatprep.subr.bf16.mxu0 0
    %288 = vmatpush1.bf16.msra.mxu0 %v266
    %289 = vmatprep.subr.bf16.mxu0 0
    %290 = vmatpush1.bf16.msra.mxu0 %v267
    %291 = vmatprep.subr.bf16.mxu0 0
    %292 = vmatpush1.bf16.msra.mxu0 %v268
    %293 = vmatprep.subr.bf16.mxu0 0
    %294 = vmatpush1.bf16.msra.mxu0 0
    %295 = vmatprep.subr.bf16.mxu0 0
    %296 = vmatpush1.bf16.msra.mxu0 0
    %297 = vmatprep.subr.bf16.mxu0 0
    %298 = vmatpush1.bf16.msra.mxu0 0
    %299 = vmatprep.subr.bf16.mxu0 0
    %300 = vmatpush1.bf16.msra.mxu0 0
    %301 = vmatprep.subr.bf16.mxu0 0
    %302 = vmatpush1.bf16.msra.mxu0 0
    %303 = vmatprep.subr.bf16.mxu0 0
    %304 = vmatpush1.bf16.msra.mxu0 0
    %305 = vmatprep.subr.bf16.mxu0 0
    %306 = vmatpush1.bf16.msra.mxu0 0
    %307 = vmatprep.subr.bf16.mxu0 0
    %308 = vmatpush1.bf16.msra.mxu0 0
    %309 = vmatprep.mubr.bf16.mxu0 0
    %310 = vmatmul.mubr.bf16.gmra.mrb[0].mxu0 %v205
    %v311 = vpop.f32.mrb[0].mxu0
    %v312 = vadd.f32 %v227, %v311
    %v313 = vpop.f32.mrb[0].mxu0
    %v314 = vpop.f32.mrb[0].mxu0
    %v315 = vadd.f32 %v227, %v314
    %v316 = vpop.f32.mrb[0].mxu0
    %317 = vdwg.mxu0
    %v318 = vmax.f32 %v312, 0.0
    %v319 = vmax.f32 %v315, 0.0
    %v320 = vpack.c.bf16 %v319, %v318
    %v321 = vld [vmem:[#allocation6] sm:$0xf]
    %v322 = vld [vmem:[#allocation6 + $0x4] sm:$0xf]
    %v323 = vld [vmem:[#allocation6 + $0x8] sm:$0xf]
    %v324 = vld [vmem:[#allocation6 + $0xc] sm:$0xf]
    %v325 = vld [vmem:[#allocation6 + $0x10] sm:$0xf]
    %v326 = vld [vmem:[#allocation6 + $0x14] sm:$0xf]
    %v327 = vld [vmem:[#allocation6 + $0x18] sm:$0xf]
    %v328 = vld [vmem:[#allocation6 + $0x1c] sm:$0xf]
    %v329 = vld [vmem:[#allocation6 + $0x20] sm:$0xf]
    %v330 = vld [vmem:[#allocation6 + $0x24] sm:$0xf]
    %v331 = vld [vmem:[#allocation6 + $0x28] sm:$0xf]
    %v332 = vld [vmem:[#allocation6 + $0x2c] sm:$0xf]
    %v333 = vld [vmem:[#allocation6 + $0x30] sm:$0xf]
    %v334 = vld [vmem:[#allocation6 + $0x34] sm:$0xf]
    %v335 = vld [vmem:[#allocation6 + $0x38] sm:$0xf]
    %v336 = vld [vmem:[#allocation6 + $0x3c] sm:$0xf]
    %v337 = vld [vmem:[%s6] sm:$0x1]
    %v339 = vlaneseq
    %v340 = vshrl.u32 %v339, 7
    %v341 = vsub.s32 0, %v340
    %v342 = vrot.slane %v337, %v341
    %v360 = vunpack.c.l.b16 %v321
    %v361 = vunpack.c.l.b16 %v322
    %v362 = vunpack.c.l.b16 %v323
    %v363 = vunpack.c.l.b16 %v324
    %v364 = vunpack.c.l.b16 %v325
    %v365 = vunpack.c.l.b16 %v326
    %v366 = vunpack.c.l.b16 %v327
    %v367 = vunpack.c.l.b16 %v328
    %v368 = vunpack.c.l.b16 %v329
    %v369 = vunpack.c.l.b16 %v330
    %v370 = vunpack.c.l.b16 %v331
    %v371 = vunpack.c.l.b16 %v332
    %v372 = vunpack.c.l.b16 %v333
    %v373 = vunpack.c.l.b16 %v334
    %v374 = vunpack.c.l.b16 %v335
    %v375 = vunpack.c.l.b16 %v336
    %v376 = vpack.c.b16 %v361, %v360
    %v377 = vpack.c.b16 %v363, %v362
    %v378 = vpack.c.b16 %v365, %v364
    %v379 = vpack.c.b16 %v367, %v366
    %v380 = vpack.c.b16 %v369, %v368
    %v381 = vpack.c.b16 %v371, %v370
    %v382 = vpack.c.b16 %v373, %v372
    %v383 = vpack.c.b16 %v375, %v374
    %392 = vmatprep.subr.bf16.mxu0 0
    %393 = vmatpush1.bf16.msra.mxu0 %v376
    %394 = vmatprep.subr.bf16.mxu0 0
    %395 = vmatpush1.bf16.msra.mxu0 %v377
    %396 = vmatprep.subr.bf16.mxu0 0
    %397 = vmatpush1.bf16.msra.mxu0 %v378
    %398 = vmatprep.subr.bf16.mxu0 0
    %399 = vmatpush1.bf16.msra.mxu0 %v379
    %400 = vmatprep.subr.bf16.mxu0 0
    %401 = vmatpush1.bf16.msra.mxu0 %v380
    %402 = vmatprep.subr.bf16.mxu0 0
    %403 = vmatpush1.bf16.msra.mxu0 %v381
    %404 = vmatprep.subr.bf16.mxu0 0
    %405 = vmatpush1.bf16.msra.mxu0 %v382
    %406 = vmatprep.subr.bf16.mxu0 0
    %407 = vmatpush1.bf16.msra.mxu0 %v383
    %408 = vmatprep.subr.bf16.mxu0 0
    %409 = vmatpush1.bf16.msra.mxu0 0
    %410 = vmatprep.subr.bf16.mxu0 0
    %411 = vmatpush1.bf16.msra.mxu0 0
    %412 = vmatprep.subr.bf16.mxu0 0
    %413 = vmatpush1.bf16.msra.mxu0 0
    %414 = vmatprep.subr.bf16.mxu0 0
    %415 = vmatpush1.bf16.msra.mxu0 0
    %416 = vmatprep.subr.bf16.mxu0 0
    %417 = vmatpush1.bf16.msra.mxu0 0
    %418 = vmatprep.subr.bf16.mxu0 0
    %419 = vmatpush1.bf16.msra.mxu0 0
    %420 = vmatprep.subr.bf16.mxu0 0
    %421 = vmatpush1.bf16.msra.mxu0 0
    %422 = vmatprep.subr.bf16.mxu0 0
    %423 = vmatpush1.bf16.msra.mxu0 0
    %424 = vmatprep.mubr.bf16.mxu0 0
    %425 = vmatmul.mubr.bf16.gmra.mrb[0].mxu0 %v320
    %v426 = vpop.f32.mrb[0].mxu0
    %v427 = vadd.f32 %v342, %v426
    %v428 = vpop.f32.mrb[0].mxu0
    %v429 = vpop.f32.mrb[0].mxu0
    %v430 = vadd.f32 %v342, %v429
    %v431 = vpop.f32.mrb[0].mxu0
    %432 = vdwg.mxu0
    %v433 = vmax.f32 %v427, 0.0
    %v434 = vmax.f32 %v430, 0.0
    %v435 = vpack.c.bf16 %v434, %v433
    %v436 = vld [vmem:[#allocation7] sm:$0xf]
    %v437 = vld [vmem:[#allocation7 + $0x4] sm:$0xf]
    %v438 = vld [vmem:[#allocation7 + $0x8] sm:$0xf]
    %v439 = vld [vmem:[#allocation7 + $0xc] sm:$0xf]
    %v440 = vld [vmem:[#allocation7 + $0x10] sm:$0xf]
    %v441 = vld [vmem:[#allocation7 + $0x14] sm:$0xf]
    %v442 = vld [vmem:[#allocation7 + $0x18] sm:$0xf]
    %v443 = vld [vmem:[#allocation7 + $0x1c] sm:$0xf]
    %v444 = vld [vmem:[#allocation7 + $0x20] sm:$0xf]
    %v445 = vld [vmem:[#allocation7 + $0x24] sm:$0xf]
    %v446 = vld [vmem:[#allocation7 + $0x28] sm:$0xf]
    %v447 = vld [vmem:[#allocation7 + $0x2c] sm:$0xf]
    %v448 = vld [vmem:[#allocation7 + $0x30] sm:$0xf]
    %v449 = vld [vmem:[#allocation7 + $0x34] sm:$0xf]
    %v450 = vld [vmem:[#allocation7 + $0x38] sm:$0xf]
    %v451 = vld [vmem:[#allocation7 + $0x3c] sm:$0xf]
    %v452 = vld [vmem:[%s8] sm:$0x1]
    %v454 = vlaneseq
    %v455 = vshrl.u32 %v454, 7
    %v456 = vsub.s32 0, %v455
    %v457 = vrot.slane %v452, %v456
    %v475 = vunpack.c.l.b16 %v436
    %v476 = vunpack.c.l.b16 %v437
    %v477 = vunpack.c.l.b16 %v438
    %v478 = vunpack.c.l.b16 %v439
    %v479 = vunpack.c.l.b16 %v440
    %v480 = vunpack.c.l.b16 %v441
    %v481 = vunpack.c.l.b16 %v442
    %v482 = vunpack.c.l.b16 %v443
    %v483 = vunpack.c.l.b16 %v444
    %v484 = vunpack.c.l.b16 %v445
    %v485 = vunpack.c.l.b16 %v446
    %v486 = vunpack.c.l.b16 %v447
    %v487 = vunpack.c.l.b16 %v448
    %v488 = vunpack.c.l.b16 %v449
    %v489 = vunpack.c.l.b16 %v450
    %v490 = vunpack.c.l.b16 %v451
    %v491 = vpack.c.b16 %v476, %v475
    %v492 = vpack.c.b16 %v478, %v477
    %v493 = vpack.c.b16 %v480, %v479
    %v494 = vpack.c.b16 %v482, %v481
    %v495 = vpack.c.b16 %v484, %v483
    %v496 = vpack.c.b16 %v486, %v485
    %v497 = vpack.c.b16 %v488, %v487
    %v498 = vpack.c.b16 %v490, %v489
    %507 = vmatprep.subr.bf16.mxu0 0
    %508 = vmatpush1.bf16.msra.mxu0 %v491
    %509 = vmatprep.subr.bf16.mxu0 0
    %510 = vmatpush1.bf16.msra.mxu0 %v492
    %511 = vmatprep.subr.bf16.mxu0 0
    %512 = vmatpush1.bf16.msra.mxu0 %v493
    %513 = vmatprep.subr.bf16.mxu0 0
    %514 = vmatpush1.bf16.msra.mxu0 %v494
    %515 = vmatprep.subr.bf16.mxu0 0
    %516 = vmatpush1.bf16.msra.mxu0 %v495
    %517 = vmatprep.subr.bf16.mxu0 0
    %518 = vmatpush1.bf16.msra.mxu0 %v496
    %519 = vmatprep.subr.bf16.mxu0 0
    %520 = vmatpush1.bf16.msra.mxu0 %v497
    %521 = vmatprep.subr.bf16.mxu0 0
    %522 = vmatpush1.bf16.msra.mxu0 %v498
    %523 = vmatprep.subr.bf16.mxu0 0
    %524 = vmatpush1.bf16.msra.mxu0 0
    %525 = vmatprep.subr.bf16.mxu0 0
    %526 = vmatpush1.bf16.msra.mxu0 0
    %527 = vmatprep.subr.bf16.mxu0 0
    %528 = vmatpush1.bf16.msra.mxu0 0
    %529 = vmatprep.subr.bf16.mxu0 0
    %530 = vmatpush1.bf16.msra.mxu0 0
    %531 = vmatprep.subr.bf16.mxu0 0
    %532 = vmatpush1.bf16.msra.mxu0 0
    %533 = vmatprep.subr.bf16.mxu0 0
    %534 = vmatpush1.bf16.msra.mxu0 0
    %535 = vmatprep.subr.bf16.mxu0 0
    %536 = vmatpush1.bf16.msra.mxu0 0
    %537 = vmatprep.subr.bf16.mxu0 0
    %538 = vmatpush1.bf16.msra.mxu0 0
    %539 = vmatprep.mubr.bf16.mxu0 0
    %540 = vmatmul.mubr.bf16.gmra.mrb[0].mxu0 %v435
    %v541 = vpop.f32.mrb[0].mxu0
    %v542 = vadd.f32 %v457, %v541
    %v543 = vpop.f32.mrb[0].mxu0
    %v544 = vpop.f32.mrb[0].mxu0
    %v545 = vadd.f32 %v457, %v544
    %v546 = vpop.f32.mrb[0].mxu0
    %547 = vdwg.mxu0
    %v548 = vpack.c.bf16 %v545, %v542
    %v550 = vunpack.c.l.b16 %v548
    %v551 = vunpack.c.h.b16 %v548
    %v552 = vpack.c.b16 %v550, %v550
    %v553 = vpack.c.b16 %v551, %v551
    %556 = vst [vmem:[%s9] sm:$0xf] %v552
    %557 = vst [vmem:[%s9 + $0x4] sm:$0xf] %v553
    // Predicated region
    $region54: #{_mlp_forward_pallas.1} parent=1 // pred_check
      _
    $region55: #{_mlp_forward_pallas.1} parent=1 // pred_check_branch
      %559 = sbr.rel (0) target = $region57
    $region56: #{_mlp_forward_pallas.1} parent=1 // pred_region
      _
    $region57: #{_mlp_forward_pallas.1} parent=1 // pred_fallthru
      _
    // Predicated region
    $region58: #{_mlp_forward_pallas.1} parent=1 // pred_check
      _
    $region59: #{_mlp_forward_pallas.1} parent=1 // pred_check_branch
      %561 = sbr.rel (0) target = $region61
    $region60: #{_mlp_forward_pallas.1} parent=1 // pred_region
      _
    $region61: #{_mlp_forward_pallas.1} parent=1 // pred_fallthru
      _
    %562 = vsyncpa [#allocation3], 1
    %563 = vsyncpa [#allocation5], 1
    %564 = vsyncpa [#allocation8], 1

</llo_original>
